<compile_context>
chip_gen: v6e
topology: v6e:2x2x1
jax: 0.10.0
libtpu: 0.0.40
codegen_flags: <defaults>
</compile_context>

<pallas_src>
import numpy as np
import jax
import jax.numpy as jnp
from jax.experimental import pallas as pl
from jax.experimental.pallas import tpu as pltpu


def _round_up(x: int, m: int) -> int:
    return ((x + m - 1) // m) * m


# --------------------------------------------------------------------------- #
# Kernels
# --------------------------------------------------------------------------- #
def _glu_kernel_acc(tile_expert_ref, x_ref, wg_ref, wu_ref, wd_ref, o_ref,
                    acc_ref):
    """Multi hidden-tile variant: f32 VMEM accumulator over the hidden axis."""
    del tile_expert_ref  # consumed only by the BlockSpec index_maps
    k = pl.program_id(1)

    @pl.when(k == 0)
    def _():
        acc_ref[...] = jnp.zeros_like(acc_ref)

    x = x_ref[...]                                                     # (TM, dim)
    g = jnp.dot(x, wg_ref[...], preferred_element_type=jnp.float32)   # (TM, TH)
    u = jnp.dot(x, wu_ref[...], preferred_element_type=jnp.float32)   # (TM, TH)
    h = jax.nn.silu(g) * u                                             # f32
    acc_ref[...] += jnp.dot(h.astype(wd_ref.dtype), wd_ref[...],
                            preferred_element_type=jnp.float32)

    @pl.when(k == pl.num_programs(1) - 1)
    def _():
        o_ref[...] = acc_ref[...].astype(o_ref.dtype)


def _glu_kernel_noacc(tile_expert_ref, x_ref, wg_ref, wu_ref, wd_ref, o_ref):
    """Single hidden-tile variant: no accumulator, no zero-init / RMW."""
    del tile_expert_ref
    x = x_ref[...]
    g = jnp.dot(x, wg_ref[...], preferred_element_type=jnp.float32)
    u = jnp.dot(x, wu_ref[...], preferred_element_type=jnp.float32)
    h = jax.nn.silu(g) * u
    o_ref[...] = jnp.dot(h.astype(wd_ref.dtype), wd_ref[...],
                         preferred_element_type=jnp.float32).astype(o_ref.dtype)


# --------------------------------------------------------------------------- #
# Wrapper
# --------------------------------------------------------------------------- #
def _default_vmem_limit_bytes() -> int:
    try:
        phys = int(pltpu.get_tpu_info().vmem_capacity_bytes)
    except Exception:       # query unavailable -> conservative (fits v7x too)
        return 48 * 1024 * 1024
    # ~85% of physical VMEM: ≈54 MiB on v7x (64 MiB), ≈108 MiB on v5e/v6e.
    return min(int(phys * 0.85), 110 * 1024 * 1024)


def grouped_experts(x, num_tokens_per_expert, gate_proj, down_proj, up_proj, *,
                    tm: int = 256, max_th: int = 2048,
                    weight_dtype=jnp.bfloat16, weight_buffers: int = 2,
                    vmem_limit_bytes=None):
    """x: (T, dim); num_tokens_per_expert: static per-expert counts summing to T.
    gate_proj/up_proj: (E, dim, hidden); down_proj: (E, hidden, dim)."""
    counts = [int(c) for c in np.asarray(num_tokens_per_expert)]
    num_experts, dim, hidden = gate_proj.shape
    assert up_proj.shape == (num_experts, dim, hidden)
    assert down_proj.shape == (num_experts, hidden, dim)
    assert len(counts) == num_experts
    total = int(sum(counts))
    assert total == x.shape[0]
    out_dtype = x.dtype

    if total == 0:
        return jnp.zeros((0, dim), out_dtype)

    if vmem_limit_bytes is None:
        vmem_limit_bytes = _default_vmem_limit_bytes()

    w_dtype = jnp.dtype(weight_dtype if weight_dtype is not None
                        else gate_proj.dtype)
    w_itemsize = w_dtype.itemsize
    out_itemsize = jnp.dtype(out_dtype).itemsize

    # ---- token tile TM: 128-multiple, no larger than the biggest expert chunk
    #      needs, shrunk if x/out double-buffers + acc would eat > 1/3 of VMEM.
    tm = max(128, _round_up(tm, 128))
    tm = min(tm, _round_up(max(counts), 128))

    def _act_bytes(t):  # 2x x-tile + 2x out-tile + f32 acc scratch
        return 2 * t * dim * (w_itemsize + out_itemsize) + 4 * t * dim

    while tm > 128 and _act_bytes(tm) > vmem_limit_bytes // 3:
        tm = max(128, (tm // 2) // 128 * 128)

    # ---- hidden tile TH: budget = vmem_limit - activation footprint; pick the
    #      128-multiple TH minimising hidden padding (ties -> largest TH).
    budget = int(vmem_limit_bytes * 0.9) - _act_bytes(tm)
    per_th_bytes = weight_buffers * 3 * dim * w_itemsize   # gate + up + down
    th_cap = (budget // per_th_bytes) // 128 * 128
    if th_cap < 128:
        raise ValueError(
            "GroupedExperts Pallas kernel: even TH=128 does not fit the VMEM "
            f"budget (dim={dim}, weight_dtype={w_dtype.name}, tm={tm}, "
            f"vmem_limit_bytes={vmem_limit_bytes}); reduce tm, use a narrower "
            "weight_dtype, or raise vmem_limit_bytes.")
    th_hi = min(max(128, (max_th // 128) * 128), th_cap, _round_up(hidden, 128))
    best = None
    for cand in range(128, th_hi + 1, 128):
        key = (_round_up(hidden, cand) - hidden, -cand)
        if best is None or key < best[0]:
            best = (key, cand)
    th = best[1]
    hidden_pad = _round_up(hidden, th)
    n_hid_tiles = hidden_pad // th

    # ---- weights: cast (+ pad the hidden axis only when needed).  Both are
    #      no-ops if the caller pre-casts / pre-pads once at init (recommended
    #      in production — avoids an extra HBM pass over the weights per call).
    # TODO(synk): fp8 (v7x) / int8 (v5e,v6e) weight path with per-expert scales.
    gate_p = gate_proj.astype(w_dtype)
    up_p = up_proj.astype(w_dtype)
    down_p = down_proj.astype(w_dtype)
    if hidden_pad != hidden:
        hp = hidden_pad - hidden       # zero cols/rows contribute exactly 0
        gate_p = jnp.pad(gate_p, ((0, 0), (0, 0), (0, hp)))
        up_p = jnp.pad(up_p, ((0, 0), (0, 0), (0, hp)))
        down_p = jnp.pad(down_p, ((0, 0), (0, hp), (0, 0)))

    # ---- pack tokens: pad every expert chunk to a multiple of TM with ONE
    #      gather (padded rows read an appended zero row); unpack is ONE gather
    #      too, and both are skipped when the counts are already TM-aligned.
    # TODO(synk): for large-T prefill, switch to in-kernel ragged addressing
    # (scalar-prefetched row offsets + masked tail tile) to drop these passes.
    padded_counts = [_round_up(c, tm) for c in counts]
    offs = np.concatenate([[0], np.cumsum(counts)]).astype(np.int64)
    pad_offs = np.concatenate([[0], np.cumsum(padded_counts)]).astype(np.int64)
    total_pad = int(pad_offs[-1])
    num_tiles = total_pad // tm
    aligned = all(c % tm == 0 for c in counts)

    tile_expert = np.zeros((num_tiles,), dtype=np.int32)
    for e in range(num_experts):
        tile_expert[pad_offs[e] // tm: pad_offs[e + 1] // tm] = e
    # TODO(synk): on v7x, order/pad tile_expert so the megacore split lands on
    # an expert boundary (stops both TCs streaming identical expert weights).

    unpack_idx = None
    if aligned:
        x_pad = x.astype(w_dtype)
    else:
        pack_idx = np.full((total_pad,), total, dtype=np.int32)   # -> zero row
        unpack_idx = np.empty((total,), dtype=np.int32)
        for e in range(num_experts):
            c = counts[e]
            if c > 0:
                pack_idx[pad_offs[e]:pad_offs[e] + c] = np.arange(
                    offs[e], offs[e] + c)
                unpack_idx[offs[e]:offs[e] + c] = np.arange(
                    pad_offs[e], pad_offs[e] + c)
        x_ext = jnp.concatenate([x, jnp.zeros((1, dim), x.dtype)], axis=0)
        x_pad = jnp.take(x_ext, jnp.asarray(pack_idx), axis=0).astype(w_dtype)

    # ---- BlockSpecs ------------------------------------------------------- #
    def _wspec(shape, idx_map):
        if weight_buffers == 2:
            return pl.BlockSpec(shape, idx_map)
        return pl.BlockSpec(shape, idx_map,
                            pipeline_mode=pl.Buffered(weight_buffers))

    in_specs = [
        pl.BlockSpec((tm, dim), lambda i, k, te: (i, 0)),                # x
        _wspec((None, dim, th), lambda i, k, te: (te[i], 0, k)),         # gate
        _wspec((None, dim, th), lambda i, k, te: (te[i], 0, k)),         # up
        _wspec((None, th, dim), lambda i, k, te: (te[i], k, 0)),         # down
    ]
    out_spec = pl.BlockSpec((tm, dim), lambda i, k, te: (i, 0))

    if n_hid_tiles == 1:
        kernel, scratch = _glu_kernel_noacc, []
    else:
        kernel, scratch = _glu_kernel_acc, [pltpu.VMEM((tm, dim), jnp.float32)]

    out_pad = pl.pallas_call(
        kernel,
        out_shape=jax.ShapeDtypeStruct((total_pad, dim), out_dtype),
        grid_spec=pltpu.PrefetchScalarGridSpec(
            num_scalar_prefetch=1,
            grid=(num_tiles, n_hid_tiles),
            in_specs=in_specs,
            out_specs=out_spec,
            scratch_shapes=scratch,
        ),
        compiler_params=pltpu.CompilerParams(
            dimension_semantics=("parallel", "arbitrary"),
            vmem_limit_bytes=int(vmem_limit_bytes),
        ),
    )(jnp.asarray(tile_expert), x_pad, gate_p, up_p, down_p)

    if aligned:
        return out_pad
    return jnp.take(out_pad, jnp.asarray(unpack_idx), axis=0)


# --------------------------------------------------------------------------- #
# Reference + test
# --------------------------------------------------------------------------- #
def _reference(x, counts, gate_proj, down_proj, up_proj):
    outs, off = [], 0
    for e, c in enumerate(counts):
        xe = x[off:off + c]
        h = jax.nn.silu(xe @ gate_proj[e]) * (xe @ up_proj[e])
        outs.append(h @ down_proj[e])
        off += c
    return jnp.concatenate(outs, axis=0)


if __name__ == "__main__":
    dim, hidden_dim, num_experts = 128, 320, 3
    counts = [8, 13, 11]                 # bsz*seq_len*experts_per_token = 32
    total = sum(counts)

    key = jax.random.PRNGKey(0)
    k1, k2, k3, k4 = jax.random.split(key, 4)
    gate_proj = 0.02 * jax.random.normal(k1, (num_experts, dim, hidden_dim),
                                         jnp.float32)
    down_proj = 0.02 * jax.random.normal(k2, (num_experts, hidden_dim, dim),
                                         jnp.float32)
    up_proj = 0.02 * jax.random.normal(k3, (num_experts, dim, hidden_dim),
                                       jnp.float32)
    x = jax.random.normal(k4, (total, dim), jnp.float32)
    num_tokens_per_expert = jnp.asarray(counts, dtype=jnp.int32)

    ref = _reference(x, counts, gate_proj, down_proj, up_proj)

    # 1) f32 weights, single hidden tile (no-accumulator fast path): exact match.
    out = grouped_experts(x, num_tokens_per_expert, gate_proj, down_proj,
                          up_proj, weight_dtype=jnp.float32)
    out = jax.block_until_ready(out)
    assert out.shape == (total, dim)
    assert jnp.allclose(out, ref, atol=1e-4, rtol=1e-4), "f32 single-tile mismatch"

    # 2) f32 weights, forced multi hidden-tile (exercises the accumulator path).
    out_mt = grouped_experts(x, num_tokens_per_expert, gate_proj, down_proj,
                             up_proj, weight_dtype=jnp.float32, max_th=128)
    out_mt = jax.block_until_ready(out_mt)
    assert jnp.allclose(out_mt, ref, atol=1e-4, rtol=1e-4), "f32 multi-tile mismatch"

    # 3) default bf16 weight-streaming path (production default): loose tol.
    out_bf = grouped_experts(x, num_tokens_per_expert, gate_proj, down_proj,
                             up_proj)
    out_bf = jax.block_until_ready(out_bf)
    assert jnp.allclose(out_bf.astype(jnp.float32), ref, atol=3e-2, rtol=3e-2), \
        "bf16 mismatch vs f32 reference"

    print("KERNEL_OK")
</pallas_src>

<mosaic_0001>
module attributes {stable_mosaic.version = 11 : i64} {
  func.func @_glu_kernel_noacc(%arg0: i32, %arg1: i32, %arg2: memref<3xi32, #tpu.memory_space<smem>>, %arg3: memref<128x128xf32, #tpu.memory_space<vmem>>, %arg4: memref<1x128x384xf32, #tpu.memory_space<vmem>>, %arg5: memref<1x128x384xf32, #tpu.memory_space<vmem>>, %arg6: memref<1x384x128xf32, #tpu.memory_space<vmem>>, %arg7: memref<128x128xf32, #tpu.memory_space<vmem>>) attributes {dimension_semantics = [#tpu.dimension_semantics<parallel>, #tpu.dimension_semantics<arbitrary>], iteration_bounds = array<i64: 3, 1>, scalar_prefetch = 1 : i64, scratch_operands = 0 : i64, tpu.core_type = #tpu.core_type<tc>, window_params = [{transform_indices = @transform_0, window_bounds = array<i64: 128, 128>}, {transform_indices = @transform_1, window_bounds = array<i64: 1, 128, 384>}, {transform_indices = @transform_2, window_bounds = array<i64: 1, 128, 384>}, {transform_indices = @transform_3, window_bounds = array<i64: 1, 384, 128>}, {transform_indices = @transform_4, window_bounds = array<i64: 128, 128>}]} {
    %c0 = arith.constant 0 : index
    %c0_0 = arith.constant 0 : index
    %0 = vector.load %arg3[%c0, %c0_0] : memref<128x128xf32, #tpu.memory_space<vmem>>, vector<128x128xf32>
    %c0_1 = arith.constant 0 : index
    %c0_2 = arith.constant 0 : index
    %c0_3 = arith.constant 0 : index
    %1 = vector.load %arg4[%c0_1, %c0_2, %c0_3] : memref<1x128x384xf32, #tpu.memory_space<vmem>>, vector<1x128x384xf32>
    %2 = vector.shape_cast %1 : vector<1x128x384xf32> to vector<128x384xf32>
    %cst = arith.constant dense<0.000000e+00> : vector<128x384xf32>
    %3 = tpu.matmul %0, %2, %cst {dimension_numbers = #tpu.dot_dimension_numbers<[1], [0], [0], [1], [0, 0, 1, 1], [], []>} : vector<128x128xf32>, vector<128x384xf32>, vector<128x384xf32> -> vector<128x384xf32>
    %c0_4 = arith.constant 0 : index
    %c0_5 = arith.constant 0 : index
    %c0_6 = arith.constant 0 : index
    %4 = vector.load %arg5[%c0_4, %c0_5, %c0_6] : memref<1x128x384xf32, #tpu.memory_space<vmem>>, vector<1x128x384xf32>
    %5 = vector.shape_cast %4 : vector<1x128x384xf32> to vector<128x384xf32>
    %cst_7 = arith.constant dense<0.000000e+00> : vector<128x384xf32>
    %6 = tpu.matmul %0, %5, %cst_7 {dimension_numbers = #tpu.dot_dimension_numbers<[1], [0], [0], [1], [0, 0, 1, 1], [], []>} : vector<128x128xf32>, vector<128x384xf32>, vector<128x384xf32> -> vector<128x384xf32>
    %7 = arith.negf %3 : vector<128x384xf32>
    %8 = math.exp %7 : vector<128x384xf32>
    %cst_8 = arith.constant 1.000000e+00 : f32
    %9 = vector.broadcast %cst_8 : f32 to vector<128x384xf32>
    %10 = arith.addf %9, %8 : vector<128x384xf32>
    %11 = arith.divf %9, %10 : vector<128x384xf32>
    %12 = arith.mulf %3, %11 : vector<128x384xf32>
    %13 = arith.mulf %12, %6 : vector<128x384xf32>
    %c0_9 = arith.constant 0 : index
    %c0_10 = arith.constant 0 : index
    %c0_11 = arith.constant 0 : index
    %14 = vector.load %arg6[%c0_9, %c0_10, %c0_11] : memref<1x384x128xf32, #tpu.memory_space<vmem>>, vector<1x384x128xf32>
    %15 = vector.shape_cast %14 : vector<1x384x128xf32> to vector<384x128xf32>
    %cst_12 = arith.constant dense<0.000000e+00> : vector<128x128xf32>
    %16 = tpu.matmul %13, %15, %cst_12 {dimension_numbers = #tpu.dot_dimension_numbers<[1], [0], [0], [1], [0, 0, 1, 1], [], []>} : vector<128x384xf32>, vector<384x128xf32>, vector<128x128xf32> -> vector<128x128xf32>
    %c0_13 = arith.constant 0 : index
    %c0_14 = arith.constant 0 : index
    %17 = vector.load %arg7[%c0_13, %c0_14] : memref<128x128xf32, #tpu.memory_space<vmem>>, vector<128x128xf32>
    tpu.vector_store %arg7[%c0_13, %c0_14], %16 {strides = array<i32>} : memref<128x128xf32, #tpu.memory_space<vmem>>, vector<128x128xf32>,
    return
  }
  func.func @transform_0(%arg0: i32, %arg1: i32, %arg2: memref<3xi32, #tpu.memory_space<smem>>) -> (i32, i32) {
    %c0_i32 = arith.constant 0 : i32
    %c0_i32_0 = arith.constant 0 : i32
    return %arg0, %c0_i32 : i32, i32
  }
  func.func @transform_1(%arg0: i32, %arg1: i32, %arg2: memref<3xi32, #tpu.memory_space<smem>>) -> (i32, i32, i32) {
    %0 = arith.index_cast %arg0 : i32 to index
    %1 = memref.load %arg2[%0] : memref<3xi32, #tpu.memory_space<smem>>
    %c0_i32 = arith.constant 0 : i32
    %c0_i32_0 = arith.constant 0 : i32
    return %1, %c0_i32, %arg1 : i32, i32, i32
  }
  func.func @transform_2(%arg0: i32, %arg1: i32, %arg2: memref<3xi32, #tpu.memory_space<smem>>) -> (i32, i32, i32) {
    %0 = arith.index_cast %arg0 : i32 to index
    %1 = memref.load %arg2[%0] : memref<3xi32, #tpu.memory_space<smem>>
    %c0_i32 = arith.constant 0 : i32
    %c0_i32_0 = arith.constant 0 : i32
    return %1, %c0_i32, %arg1 : i32, i32, i32
  }
  func.func @transform_3(%arg0: i32, %arg1: i32, %arg2: memref<3xi32, #tpu.memory_space<smem>>) -> (i32, i32, i32) {
    %0 = arith.index_cast %arg0 : i32 to index
    %1 = memref.load %arg2[%0] : memref<3xi32, #tpu.memory_space<smem>>
    %c0_i32 = arith.constant 0 : i32
    %c0_i32_0 = arith.constant 0 : i32
    return %1, %arg1, %c0_i32 : i32, i32, i32
  }
  func.func @transform_4(%arg0: i32, %arg1: i32, %arg2: memref<3xi32, #tpu.memory_space<smem>>) -> (i32, i32) {
    %c0_i32 = arith.constant 0 : i32
    %c0_i32_0 = arith.constant 0 : i32
    return %arg0, %c0_i32 : i32, i32
  }
}

</mosaic_0001>

<llo_original>
// kernel: tpu_custom_call.1
$region0: #{tpu_custom_call.1}
  #allocation0 [shape = 'u32[]', space=smem, size = 0x4, offset = 0x4, fixed_abs, tag = 'smem constant byte address 0x4 - core index']
  #allocation1 [shape = 'u32[144,128]{1,0:T(1,128)}', space=vmem, size = 0x12000, scoped, tag = 'internal scratch']
  #allocation2 [shape = 's32[1]{0}', space=sflag, size = 0x4, scoped, tag = 'scoped memory for tpu_custom_call.1']
  #allocation3 [shape = 'u8[512]{0}', space=smem, size = 0x200, scoped, tag = 'prefetched SMEM operand 0']
  %s0 = inlined_call_operand.hbm [shape: s32[3], index: 0, kind: input, shape index: {}]
  %s1 = inlined_call_operand.hbm [shape: f32[384,128], index: 1, kind: input, shape index: {}]
  %s2 = inlined_call_operand.hbm [shape: f32[3,128,384], index: 2, kind: input, shape index: {}]
  %s3 = inlined_call_operand.hbm [shape: f32[3,128,384], index: 3, kind: input, shape index: {}]
  %s4 = inlined_call_operand.hbm [shape: f32[3,384,128], index: 4, kind: input, shape index: {}]
  %s5 = inlined_call_operand.hbm [shape: f32[384,128], index: 5, kind: output, shape index: {}]
  %s6 = sld [smem:[#allocation0]]
  $region65: #{tpu_custom_call.1} parent=0
    _
  %s8 = ssub.s32 1, %s6
  %s9 = scalar_select 0, %s8, %s6
  %11 = dma.hbm_to_smem %s0, 16, [#allocation3], [#allocation2]
  %12 = dma.done [#allocation2], 16
  %13 = sfence
  $region1: #{tpu_custom_call.1} parent=0
    #allocation4 [shape = 'u8[131072]{0}', space=vmem, size = 0x20000, scoped, tag = 'input window, operand 1']
    #allocation5 [shape = 's32[2]{0}', space=sflag, size = 0x8, scoped, tag = 'scoped memory for tpu_custom_call.1']
    #allocation6 [shape = 's32[2]{0}', space=sflag, size = 0x8, scoped, tag = 'scoped memory for tpu_custom_call.1']
    #allocation7 [shape = 'u8[393216]{0}', space=vmem, size = 0x60000, scoped, tag = 'input window, operand 2']
    #allocation8 [shape = 's32[2]{0}', space=sflag, size = 0x8, scoped, tag = 'scoped memory for tpu_custom_call.1']
    #allocation9 [shape = 'u8[393216]{0}', space=vmem, size = 0x60000, scoped, tag = 'input window, operand 3']
    #allocation10 [shape = 'u8[393216]{0}', space=vmem, size = 0x60000, scoped, tag = 'input window, operand 4']
    #allocation11 [shape = 's32[2]{0}', space=sflag, size = 0x8, scoped, tag = 'scoped memory for tpu_custom_call.1']
    #allocation12 [shape = 'u8[131072]{0}', space=vmem, size = 0x20000, scoped, tag = 'output window, operand 0']
    %14 = vsyncpa [#allocation5], 0
    %s15 = scalar_lea.sflag [#allocation5], 1
    %16 = vsyncpa %s15, 0
    %17 = vsyncpa [#allocation8], 0
    %s18 = scalar_lea.sflag [#allocation8], 1
    %19 = vsyncpa %s18, 0
    %20 = vsyncpa [#allocation11], 0
    %s21 = scalar_lea.sflag [#allocation11], 1
    %22 = vsyncpa %s21, 0
    %23 = vsyncpa [#allocation6], 0
    %s24 = scalar_lea.sflag [#allocation6], 1
    %25 = vsyncpa %s24, 0
    loop: start=0, step=1, limit=5
    $region2: #{tpu_custom_call.1} parent=1 // loop_pre_header
      _
    $region3: #{tpu_custom_call.1} parent=1 // loop_header
      %s27 = sphi 0, %s31
      %p28 = scmp.ge.s32.totalorder %s27, 5
      %s34 = sphi 0, %s46
      %s35 = sphi 0, %s42
      %s36 = sphi 0, %s34
      %s37 = sphi 0, %s35
      %s38 = sphi 0, %s36
      %s39 = sphi 0, %s37
      %s49 = sphi 0, %s51
      %s52 = sphi 0, %s49
      %s53 = sphi 0, %s52
      %s69 = sphi 0, %s53
      %s79 = sphi 0, %s81
      %s82 = sphi 0, %s79
      %s83 = sphi 0, %s82
      %s99 = sphi 0, %s83
      %s109 = sphi 0, %s111
      %s112 = sphi 0, %s109
      %s113 = sphi 0, %s112
      %s129 = sphi 0, %s113
      %s139 = sphi 0, %s141
      %s142 = sphi 0, %s139
      %s143 = sphi 0, %s142
      %s159 = sphi 0, %s143
      %s165 = sphi 0, %s167
      %s168 = sphi 0, %s165
      %s169 = sphi 0, %s168
      %s185 = sphi 0, %s169
    $region4: #{tpu_custom_call.1} parent=1 // loop_header_branch
      %30 = sbr.rel (%p28) target = $region8
    $region5: #{tpu_custom_call.1} parent=1 // loop_body
      %s32 = ssub.s32 %s27, 1
      %s33 = ssub.s32 %s27, 2
      %s40 = sadd.s32 1, %s35
      %p41 = scmp.ge.s32.totalorder %s40, 1
      %s42 = scalar_select %p41, 0, %s40
      %s43 = sadd.s32 1, %s34
      %s44 = scalar_select %p41, %s43, %s34
      %p45 = scmp.ge.s32.totalorder %s44, 3
      %s46 = scalar_select %p45, 0, %s44
      %s47 = ssub.s32 %s34, %s46
      %p48 = scmp.eq.s32.totalorder %s47, 0
      %s50 = sadd.s32 %s49, 1
      %s51 = scalar_select %p48, %s49, %s50
      %p54 = pneg %p48
      %p55 = scmp.eq.s32.totalorder %s27, 2
      %p56 = por %p54, %p55
      %p57 = scmp.ne.s32.totalorder %s49, %s52
      %p58 = scmp.eq.s32.totalorder %s27, 0
      %p59 = por %p57, %p58
      %p60 = scmp.ne.s32.totalorder %s49, %s52
      %p61 = scmp.eq.s32.totalorder %s32, 2
      %p62 = por %p60, %p61
      %p63 = scmp.ne.s32.totalorder %s52, %s53
      %p64 = scmp.eq.s32.totalorder %s32, 0
      %p65 = por %p63, %p64
      %p66 = scmp.ne.s32.totalorder %s52, %s53
      %p67 = scmp.eq.s32.totalorder %s33, 2
      %p68 = por %p66, %p67
      %p70 = scmp.ne.s32.totalorder %s53, %s69
      %p71 = scmp.eq.s32.totalorder %s33, 0
      %p72 = por %p70, %p71
      %s73 = sld [smem:[#allocation3 + %s34]]
      %s74 = sld [smem:[#allocation3 + %s46]]
      %s75 = ssub.s32 %s73, %s74
      %s76 = ssub.s32 %s35, %s42
      %s77 = sor.u32 %s75, %s76
      %p78 = scmp.eq.s32.totalorder %s77, 0
      %s80 = sadd.s32 %s79, 1
      %s81 = scalar_select %p78, %s79, %s80
      %p84 = pneg %p78
      %p85 = scmp.eq.s32.totalorder %s27, 2
      %p86 = por %p84, %p85
      %p87 = scmp.ne.s32.totalorder %s79, %s82
      %p88 = scmp.eq.s32.totalorder %s27, 0
      %p89 = por %p87, %p88
      %p90 = scmp.ne.s32.totalorder %s79, %s82
      %p91 = scmp.eq.s32.totalorder %s32, 2
      %p92 = por %p90, %p91
      %p93 = scmp.ne.s32.totalorder %s82, %s83
      %p94 = scmp.eq.s32.totalorder %s32, 0
      %p95 = por %p93, %p94
      %p96 = scmp.ne.s32.totalorder %s82, %s83
      %p97 = scmp.eq.s32.totalorder %s33, 2
      %p98 = por %p96, %p97
      %p100 = scmp.ne.s32.totalorder %s83, %s99
      %p101 = scmp.eq.s32.totalorder %s33, 0
      %p102 = por %p100, %p101
      %s103 = sld [smem:[#allocation3 + %s34]]
      %s104 = sld [smem:[#allocation3 + %s46]]
      %s105 = ssub.s32 %s103, %s104
      %s106 = ssub.s32 %s35, %s42
      %s107 = sor.u32 %s105, %s106
      %p108 = scmp.eq.s32.totalorder %s107, 0
      %s110 = sadd.s32 %s109, 1
      %s111 = scalar_select %p108, %s109, %s110
      %p114 = pneg %p108
      %p115 = scmp.eq.s32.totalorder %s27, 2
      %p116 = por %p114, %p115
      %p117 = scmp.ne.s32.totalorder %s109, %s112
      %p118 = scmp.eq.s32.totalorder %s27, 0
      %p119 = por %p117, %p118
      %p120 = scmp.ne.s32.totalorder %s109, %s112
      %p121 = scmp.eq.s32.totalorder %s32, 2
      %p122 = por %p120, %p121
      %p123 = scmp.ne.s32.totalorder %s112, %s113
      %p124 = scmp.eq.s32.totalorder %s32, 0
      %p125 = por %p123, %p124
      %p126 = scmp.ne.s32.totalorder %s112, %s113
      %p127 = scmp.eq.s32.totalorder %s33, 2
      %p128 = por %p126, %p127
      %p130 = scmp.ne.s32.totalorder %s113, %s129
      %p131 = scmp.eq.s32.totalorder %s33, 0
      %p132 = por %p130, %p131
      %s133 = sld [smem:[#allocation3 + %s34]]
      %s134 = sld [smem:[#allocation3 + %s46]]
      %s135 = ssub.s32 %s133, %s134
      %s136 = ssub.s32 %s35, %s42
      %s137 = sor.u32 %s135, %s136
      %p138 = scmp.eq.s32.totalorder %s137, 0
      %s140 = sadd.s32 %s139, 1
      %s141 = scalar_select %p138, %s139, %s140
      %p144 = pneg %p138
      %p145 = scmp.eq.s32.totalorder %s27, 2
      %p146 = por %p144, %p145
      %p147 = scmp.ne.s32.totalorder %s139, %s142
      %p148 = scmp.eq.s32.totalorder %s27, 0
      %p149 = por %p147, %p148
      %p150 = scmp.ne.s32.totalorder %s139, %s142
      %p151 = scmp.eq.s32.totalorder %s32, 2
      %p152 = por %p150, %p151
      %p153 = scmp.ne.s32.totalorder %s142, %s143
      %p154 = scmp.eq.s32.totalorder %s32, 0
      %p155 = por %p153, %p154
      %p156 = scmp.ne.s32.totalorder %s142, %s143
      %p157 = scmp.eq.s32.totalorder %s33, 2
      %p158 = por %p156, %p157
      %p160 = scmp.ne.s32.totalorder %s143, %s159
      %p161 = scmp.eq.s32.totalorder %s33, 0
      %p162 = por %p160, %p161
      %s163 = ssub.s32 %s34, %s46
      %p164 = scmp.eq.s32.totalorder %s163, 0
      %s166 = sadd.s32 %s165, 1
      %s167 = scalar_select %p164, %s165, %s166
      %p170 = pneg %p164
      %p171 = scmp.eq.s32.totalorder %s27, 2
      %p172 = por %p170, %p171
      %p173 = scmp.ne.s32.totalorder %s165, %s168
      %p174 = scmp.eq.s32.totalorder %s27, 0
      %p175 = por %p173, %p174
      %p176 = scmp.ne.s32.totalorder %s165, %s168
      %p177 = scmp.eq.s32.totalorder %s32, 2
      %p178 = por %p176, %p177
      %p179 = scmp.ne.s32.totalorder %s168, %s169
      %p180 = scmp.eq.s32.totalorder %s32, 0
      %p181 = por %p179, %p180
      %p182 = scmp.ne.s32.totalorder %s168, %s169
      %p183 = scmp.eq.s32.totalorder %s33, 2
      %p184 = por %p182, %p183
      %p186 = scmp.ne.s32.totalorder %s169, %s185
      %p187 = scmp.eq.s32.totalorder %s33, 0
      %p188 = por %p186, %p187
      %p189 = scmp.le.s32.totalorder 1, %s27
      %p190 = scmp.lt.s32.totalorder %s27, 4
      %p191 = pnand %p189, %p190
      %p192 = pneg %p191
      // Predicated region
      $region9: #{tpu_custom_call.1} parent=5 // pred_check
        _
      $region10: #{tpu_custom_call.1} parent=5 // pred_check_branch
        %194 = sbr.rel (%p191) target = $region12
      $region11: #{tpu_custom_call.1} parent=5 // pred_region
        %s195 = ssub.s32 %s27, 1
      $region12: #{tpu_custom_call.1} parent=5 // pred_fallthru
        _
      %p196 = scmp.lt.s32.totalorder %s27, 3
      // Predicated region
      $region13: #{tpu_custom_call.1} parent=5 // pred_check
        %p197 = pneg %p196
      $region14: #{tpu_custom_call.1} parent=5 // pred_check_branch
        %199 = sbr.rel (%p197) target = $region16
      $region15: #{tpu_custom_call.1} parent=5 // pred_region
        // Predicated region
        $region17: #{tpu_custom_call.1} parent=15 // pred_check
          %p200 = pneg %p59
        $region18: #{tpu_custom_call.1} parent=15 // pred_check_branch
          %202 = sbr.rel (%p200) target = $region20
        $region19: #{tpu_custom_call.1} parent=15 // pred_region
          %s203 = sand.u32 %s49, 1
          %s204 = scalar_lea.sflag [#allocation5], %s203
          %s205 = sand.u32 %s49, 1
          %s206 = smul.addr %s205, 128
          %s207 = scalar_lea.vmem [#allocation4], %s206
          %s208 = smul.u32 16, %s34
          %s210 = ssub.s32 2048, 2048
          %211 = vsyncadd %s204, %s210
          %s212 = smul.addr %s208, 128
          %s213 = scalar_lea.hbm %s1, %s212
          %s214 = sshll.u32 %s207, 4
          %s215 = int_to_ptr.vmem [resolvable:$true] %s214
          %220 = dma.hbm_to_vmem [thread:$0]  %s213, 2048, %s215, %s204, 128, 128, 8
        $region20: #{tpu_custom_call.1} parent=15 // pred_fallthru
          _
        // Predicated region
        $region21: #{tpu_custom_call.1} parent=15 // pred_check
          %p221 = pneg %p89
        $region22: #{tpu_custom_call.1} parent=15 // pred_check_branch
          %223 = sbr.rel (%p221) target = $region24
        $region23: #{tpu_custom_call.1} parent=15 // pred_region
          %s224 = sand.u32 %s27, 1
          %s225 = scalar_lea.sflag [#allocation8], %s224
          %s226 = sand.u32 %s79, 1
          %s227 = smul.addr %s226, 384
          %s228 = scalar_lea.vmem [#allocation7], %s227
          %s229 = sld [smem:[#allocation3 + %s34]]
          %s230 = smul.u32 3, %s35
          %s232 = ssub.s32 6144, 6144
          %233 = vsyncadd %s225, %s232
          %s234 = smul.addr %s229, 48
          %s235 = sadd.s32 %s230, %s234
          %s236 = smul.addr %s235, 128
          %s237 = scalar_lea.hbm %s2, %s236
          %s238 = sshll.u32 %s228, 4
          %s239 = int_to_ptr.vmem [resolvable:$true] %s238
          %244 = dma.hbm_to_vmem [thread:$0]  %s237, 6144, %s239, %s225, 384, 384, 24
        $region24: #{tpu_custom_call.1} parent=15 // pred_fallthru
          _
        // Predicated region
        $region25: #{tpu_custom_call.1} parent=15 // pred_check
          %p245 = pneg %p119
        $region26: #{tpu_custom_call.1} parent=15 // pred_check_branch
          %247 = sbr.rel (%p245) target = $region28
        $region27: #{tpu_custom_call.1} parent=15 // pred_region
          %s248 = sand.u32 %s27, 1
          %s249 = scalar_lea.sflag [#allocation8], %s248
          %s250 = sand.u32 %s109, 1
          %s251 = smul.addr %s250, 384
          %s252 = scalar_lea.vmem [#allocation9], %s251
          %s253 = sld [smem:[#allocation3 + %s34]]
          %s254 = smul.u32 3, %s35
          %s256 = ssub.s32 6144, 6144
          %257 = vsyncadd %s249, %s256
          %s258 = smul.addr %s253, 48
          %s259 = sadd.s32 %s254, %s258
          %s260 = smul.addr %s259, 128
          %s261 = scalar_lea.hbm %s3, %s260
          %s262 = sshll.u32 %s252, 4
          %s263 = int_to_ptr.vmem [resolvable:$true] %s262
          %268 = dma.hbm_to_vmem [thread:$0]  %s261, 6144, %s263, %s249, 384, 384, 24
        $region28: #{tpu_custom_call.1} parent=15 // pred_fallthru
          _
        // Predicated region
        $region29: #{tpu_custom_call.1} parent=15 // pred_check
          %p269 = pneg %p149
        $region30: #{tpu_custom_call.1} parent=15 // pred_check_branch
          %271 = sbr.rel (%p269) target = $region32
        $region31: #{tpu_custom_call.1} parent=15 // pred_region
          %s272 = sand.u32 %s139, 1
          %s273 = scalar_lea.sflag [#allocation11], %s272
          %s274 = sand.u32 %s139, 1
          %s275 = smul.addr %s274, 384
          %s276 = scalar_lea.vmem [#allocation10], %s275
          %s277 = sld [smem:[#allocation3 + %s34]]
          %s278 = smul.u32 48, %s35
          %s280 = ssub.s32 6144, 6144
          %281 = vsyncadd %s273, %s280
          %s282 = smul.addr %s277, 48
          %s283 = sadd.s32 %s278, %s282
          %s284 = smul.addr %s283, 128
          %s285 = scalar_lea.hbm %s4, %s284
          %s286 = sshll.u32 %s276, 4
          %s287 = int_to_ptr.vmem [resolvable:$true] %s286
          %292 = dma.hbm_to_vmem [thread:$0]  %s285, 6144, %s287, %s273, 128, 128, 8
        $region32: #{tpu_custom_call.1} parent=15 // pred_fallthru
          _
      $region16: #{tpu_custom_call.1} parent=5 // pred_fallthru
        _
      %p293 = scmp.le.s32.totalorder 1, %s27
      %p294 = scmp.lt.s32.totalorder %s27, 4
      %p295 = pnand %p293, %p294
      %p296 = pneg %p295
      // Predicated region
      $region33: #{tpu_custom_call.1} parent=5 // pred_check
        _
      $region34: #{tpu_custom_call.1} parent=5 // pred_check_branch
        %298 = sbr.rel (%p295) target = $region36
      $region35: #{tpu_custom_call.1} parent=5 // pred_region
        %s299 = ssub.s32 %s27, 1
        %s300 = sand.u32 %s52, 1
        %s301 = scalar_lea.sflag [#allocation5], %s300
        %s302 = sand.u32 %s52, 1
        %s303 = smul.addr %s302, 128
        %s304 = scalar_lea.vmem [#allocation4], %s303
        // Predicated region
        $region37: #{tpu_custom_call.1} parent=35 // pred_check
          %p305 = pneg %p65
        $region38: #{tpu_custom_call.1} parent=35 // pred_check_branch
          %307 = sbr.rel (%p305) target = $region40
        $region39: #{tpu_custom_call.1} parent=35 // pred_region
          %308 = dma.done %s301, 2048
        $region40: #{tpu_custom_call.1} parent=35 // pred_fallthru
          _
        %s309 = sand.u32 %s32, 1
        %s310 = scalar_lea.sflag [#allocation8], %s309
        %s311 = sand.u32 %s82, 1
        %s312 = smul.addr %s311, 384
        %s313 = scalar_lea.vmem [#allocation7], %s312
        // Predicated region
        $region41: #{tpu_custom_call.1} parent=35 // pred_check
          %p314 = pneg %p95
        $region42: #{tpu_custom_call.1} parent=35 // pred_check_branch
          %316 = sbr.rel (%p314) target = $region44
        $region43: #{tpu_custom_call.1} parent=35 // pred_region
          %317 = dma.done %s310, 6144
        $region44: #{tpu_custom_call.1} parent=35 // pred_fallthru
          _
        %s318 = sand.u32 %s32, 1
        %s319 = scalar_lea.sflag [#allocation8], %s318
        %s320 = sand.u32 %s112, 1
        %s321 = smul.addr %s320, 384
        %s322 = scalar_lea.vmem [#allocation9], %s321
        // Predicated region
        $region45: #{tpu_custom_call.1} parent=35 // pred_check
          %p323 = pneg %p125
        $region46: #{tpu_custom_call.1} parent=35 // pred_check_branch
          %325 = sbr.rel (%p323) target = $region48
        $region47: #{tpu_custom_call.1} parent=35 // pred_region
          %326 = dma.done %s319, 6144
        $region48: #{tpu_custom_call.1} parent=35 // pred_fallthru
          _
        %s327 = sand.u32 %s142, 1
        %s328 = scalar_lea.sflag [#allocation11], %s327
        %s329 = sand.u32 %s142, 1
        %s330 = smul.addr %s329, 384
        %s331 = scalar_lea.vmem [#allocation10], %s330
        // Predicated region
        $region49: #{tpu_custom_call.1} parent=35 // pred_check
          %p332 = pneg %p155
        $region50: #{tpu_custom_call.1} parent=35 // pred_check_branch
          %334 = sbr.rel (%p332) target = $region52
        $region51: #{tpu_custom_call.1} parent=35 // pred_region
          %335 = dma.done %s328, 6144
        $region52: #{tpu_custom_call.1} parent=35 // pred_fallthru
          _
        %s336 = sand.u32 %s52, 1
        %s337 = scalar_lea.sflag [#allocation5], %s336
        %s338 = sand.u32 %s52, 1
        %s339 = smul.addr %s338, 128
        %s340 = scalar_lea.vmem [#allocation4], %s339
        %p341 = pneg %p65
        %p342 = pneg %p62
        %s343 = sand.u32 %s32, 1
        %s344 = scalar_lea.sflag [#allocation8], %s343
        %s345 = sand.u32 %s82, 1
        %s346 = smul.addr %s345, 384
        %s347 = scalar_lea.vmem [#allocation7], %s346
        %p348 = pneg %p95
        %p349 = pneg %p92
        %s350 = sand.u32 %s32, 1
        %s351 = scalar_lea.sflag [#allocation8], %s350
        %s352 = sand.u32 %s112, 1
        %s353 = smul.addr %s352, 384
        %s354 = scalar_lea.vmem [#allocation9], %s353
        %p355 = pneg %p125
        %p356 = pneg %p122
        %s357 = sand.u32 %s142, 1
        %s358 = scalar_lea.sflag [#allocation11], %s357
        %s359 = sand.u32 %s142, 1
        %s360 = smul.addr %s359, 384
        %s361 = scalar_lea.vmem [#allocation10], %s360
        %p362 = pneg %p155
        %p363 = pneg %p152
        %p364 = pneg %p181
        %p365 = pneg %p178
        %s366 = sand.u32 %s168, 1
        %s367 = scalar_lea.sflag [#allocation6], %s366
        %s368 = sand.u32 %s168, 1
        %s369 = smul.addr %s368, 128
        %s370 = scalar_lea.vmem [#allocation12], %s369
        %s371 = smul.u32 16, %s36
        %s372 = sld [smem:[#allocation3 + %s36]]
        %s373 = smul.u32 3, %s37
        %s374 = sld [smem:[#allocation3 + %s36]]
        %s375 = smul.u32 3, %s37
        %s376 = sld [smem:[#allocation3 + %s36]]
        %s377 = smul.u32 48, %s37
        %s378 = smul.u32 16, %s36
        %v379 = vld [vmem:[%s304] sm:$0xff]
        %v380 = vld [vmem:[%s304 + $0x8] sm:$0xff]
        %v381 = vld [vmem:[%s304 + $0x10] sm:$0xff]
        %v382 = vld [vmem:[%s304 + $0x18] sm:$0xff]
        %v383 = vld [vmem:[%s304 + $0x20] sm:$0xff]
        %v384 = vld [vmem:[%s304 + $0x28] sm:$0xff]
        %v385 = vld [vmem:[%s304 + $0x30] sm:$0xff]
        %v386 = vld [vmem:[%s304 + $0x38] sm:$0xff]
        %v387 = vld [vmem:[%s304 + $0x40] sm:$0xff]
        %v388 = vld [vmem:[%s304 + $0x48] sm:$0xff]
        %v389 = vld [vmem:[%s304 + $0x50] sm:$0xff]
        %v390 = vld [vmem:[%s304 + $0x58] sm:$0xff]
        %v391 = vld [vmem:[%s304 + $0x60] sm:$0xff]
        %v392 = vld [vmem:[%s304 + $0x68] sm:$0xff]
        %v393 = vld [vmem:[%s304 + $0x70] sm:$0xff]
        %v394 = vld [vmem:[%s304 + $0x78] sm:$0xff]
        %v395 = vld [vmem:[%s313] sm:$0xff]
        %v396 = vld [vmem:[%s313 + $0x8] sm:$0xff]
        %v397 = vld [vmem:[%s313 + $0x10] sm:$0xff]
        %v398 = vld [vmem:[%s313 + $0x18] sm:$0xff]
        %v399 = vld [vmem:[%s313 + $0x20] sm:$0xff]
        %v400 = vld [vmem:[%s313 + $0x28] sm:$0xff]
        %v401 = vld [vmem:[%s313 + $0x30] sm:$0xff]
        %v402 = vld [vmem:[%s313 + $0x38] sm:$0xff]
        %v403 = vld [vmem:[%s313 + $0x40] sm:$0xff]
        %v404 = vld [vmem:[%s313 + $0x48] sm:$0xff]
        %v405 = vld [vmem:[%s313 + $0x50] sm:$0xff]
        %v406 = vld [vmem:[%s313 + $0x58] sm:$0xff]
        %v407 = vld [vmem:[%s313 + $0x60] sm:$0xff]
        %v408 = vld [vmem:[%s313 + $0x68] sm:$0xff]
        %v409 = vld [vmem:[%s313 + $0x70] sm:$0xff]
        %v410 = vld [vmem:[%s313 + $0x78] sm:$0xff]
        %v411 = vld [vmem:[%s313 + $0x80] sm:$0xff]
        %v412 = vld [vmem:[%s313 + $0x88] sm:$0xff]
        %v413 = vld [vmem:[%s313 + $0x90] sm:$0xff]
        %v414 = vld [vmem:[%s313 + $0x98] sm:$0xff]
        %v415 = vld [vmem:[%s313 + $0xa0] sm:$0xff]
        %v416 = vld [vmem:[%s313 + $0xa8] sm:$0xff]
        %v417 = vld [vmem:[%s313 + $0xb0] sm:$0xff]
        %v418 = vld [vmem:[%s313 + $0xb8] sm:$0xff]
        %v419 = vld [vmem:[%s313 + $0xc0] sm:$0xff]
        %v420 = vld [vmem:[%s313 + $0xc8] sm:$0xff]
        %v421 = vld [vmem:[%s313 + $0xd0] sm:$0xff]
        %v422 = vld [vmem:[%s313 + $0xd8] sm:$0xff]
        %v423 = vld [vmem:[%s313 + $0xe0] sm:$0xff]
        %v424 = vld [vmem:[%s313 + $0xe8] sm:$0xff]
        %v425 = vld [vmem:[%s313 + $0xf0] sm:$0xff]
        %v426 = vld [vmem:[%s313 + $0xf8] sm:$0xff]
        %v427 = vld [vmem:[%s313 + $0x100] sm:$0xff]
        %v428 = vld [vmem:[%s313 + $0x108] sm:$0xff]
        %v429 = vld [vmem:[%s313 + $0x110] sm:$0xff]
        %v430 = vld [vmem:[%s313 + $0x118] sm:$0xff]
        %v431 = vld [vmem:[%s313 + $0x120] sm:$0xff]
        %v432 = vld [vmem:[%s313 + $0x128] sm:$0xff]
        %v433 = vld [vmem:[%s313 + $0x130] sm:$0xff]
        %v434 = vld [vmem:[%s313 + $0x138] sm:$0xff]
        %v435 = vld [vmem:[%s313 + $0x140] sm:$0xff]
        %v436 = vld [vmem:[%s313 + $0x148] sm:$0xff]
        %v437 = vld [vmem:[%s313 + $0x150] sm:$0xff]
        %v438 = vld [vmem:[%s313 + $0x158] sm:$0xff]
        %v439 = vld [vmem:[%s313 + $0x160] sm:$0xff]
        %v440 = vld [vmem:[%s313 + $0x168] sm:$0xff]
        %v441 = vld [vmem:[%s313 + $0x170] sm:$0xff]
        %v442 = vld [vmem:[%s313 + $0x178] sm:$0xff]
        %443 = vmatprep.subr.mxu0 %v441
        %444 = vmatpush1.msra.mxu0 %v440
        %445 = vmatprep.subr.mxu0 %v438
        %446 = vmatpush1.msra.mxu0 %v437
        %447 = vmatprep.subr.mxu0 %v435
        %448 = vmatpush1.msra.mxu0 %v434
        %449 = vmatprep.subr.mxu0 %v432
        %450 = vmatpush1.msra.mxu0 %v431
        %451 = vmatprep.subr.mxu0 %v429
        %452 = vmatpush1.msra.mxu0 %v428
        %453 = vmatprep.subr.mxu0 %v426
        %454 = vmatpush1.msra.mxu0 %v425
        %455 = vmatprep.subr.mxu0 %v423
        %456 = vmatpush1.msra.mxu0 %v422
        %457 = vmatprep.subr.mxu0 %v420
        %458 = vmatpush1.msra.mxu0 %v419
        %459 = vmatprep.subr.mxu0 %v417
        %460 = vmatpush1.msra.mxu0 %v416
        %461 = vmatprep.subr.mxu0 %v414
        %462 = vmatpush1.msra.mxu0 %v413
        %463 = vmatprep.subr.mxu0 %v411
        %464 = vmatpush1.msra.mxu0 %v410
        %465 = vmatprep.subr.mxu0 %v408
        %466 = vmatpush1.msra.mxu0 %v407
        %467 = vmatprep.subr.mxu0 %v405
        %468 = vmatpush1.msra.mxu0 %v404
        %469 = vmatprep.subr.mxu0 %v402
        %470 = vmatpush1.msra.mxu0 %v401
        %471 = vmatprep.subr.mxu0 %v399
        %472 = vmatpush1.msra.mxu0 %v398
        %473 = vmatprep.subr.mxu0 %v396
        %474 = vmatpush1.msra.mxu0 %v395
        %475 = vmatprep.subr.mxu0 0.0
        %476 = vmatpush2.msra.mxu0 0.0
        %477 = vmatprep.subr.mxu0 0.0
        %478 = vmatpush2.msra.mxu0 0.0
        %479 = vmatprep.subr.mxu0 0.0
        %480 = vmatpush2.msra.mxu0 0.0
        %481 = vmatprep.subr.mxu0 0.0
        %482 = vmatpush2.msra.mxu0 0.0
        %483 = vmatprep.subr.mxu0 0.0
        %484 = vmatpush2.msra.mxu0 0.0
        %485 = vmatprep.subr.mxu0 0.0
        %486 = vmatpush2.msra.mxu0 0.0
        %487 = vmatprep.subr.mxu0 0.0
        %488 = vmatpush2.msra.mxu0 0.0
        %489 = vmatprep.subr.mxu0 0.0
        %490 = vmatpush2.msra.mxu0 0.0
        %491 = vmatprep.subr.mxu0 0.0
        %492 = vmatpush2.msra.mxu0 0.0
        %493 = vmatprep.subr.mxu0 0.0
        %494 = vmatpush2.msra.mxu0 0.0
        %495 = vmatprep.subr.mxu0 0.0
        %496 = vmatpush2.msra.mxu0 0.0
        %497 = vmatprep.subr.mxu0 0.0
        %498 = vmatpush2.msra.mxu0 0.0
        %499 = vmatprep.subr.mxu0 0.0
        %500 = vmatpush2.msra.mxu0 0.0
        %501 = vmatprep.subr.mxu0 0.0
        %502 = vmatpush2.msra.mxu0 0.0
        %503 = vmatprep.subr.mxu0 0.0
        %504 = vmatpush2.msra.mxu0 0.0
        %505 = vmatprep.subr.mxu0 0.0
        %506 = vmatpush2.msra.mxu0 0.0
        %507 = vmatprep.mubr.f32.mxu0 0.0
        %508 = vmatmul.mubr.f32.gmra.mxu0 %v379
        %v509 = vpop.f32.mrf.mxu0
        %v510 = vadd.f32 0.0, %v509
        %v511 = vpop.f32.mrf.mxu0
        %v512 = vadd.f32 0.0, %v511
        %513 = vmatprep.mubr.f32.mxu0 0.0
        %514 = vmatmul.mubr.f32.gmra.mxu0 %v380
        %v515 = vpop.f32.mrf.mxu0
        %v516 = vadd.f32 0.0, %v515
        %v517 = vpop.f32.mrf.mxu0
        %v518 = vadd.f32 0.0, %v517
        %519 = vmatprep.mubr.f32.mxu0 0.0
        %520 = vmatmul.mubr.f32.gmra.mxu0 %v381
        %v521 = vpop.f32.mrf.mxu0
        %v522 = vadd.f32 0.0, %v521
        %v523 = vpop.f32.mrf.mxu0
        %v524 = vadd.f32 0.0, %v523
        %525 = vmatprep.mubr.f32.mxu0 0.0
        %526 = vmatmul.mubr.f32.gmra.mxu0 %v382
        %v527 = vpop.f32.mrf.mxu0
        %v528 = vadd.f32 0.0, %v527
        %v529 = vpop.f32.mrf.mxu0
        %v530 = vadd.f32 0.0, %v529
        %531 = vmatprep.mubr.f32.mxu0 0.0
        %532 = vmatmul.mubr.f32.gmra.mxu0 %v383
        %v533 = vpop.f32.mrf.mxu0
        %v534 = vadd.f32 0.0, %v533
        %v535 = vpop.f32.mrf.mxu0
        %v536 = vadd.f32 0.0, %v535
        %537 = vmatprep.mubr.f32.mxu0 0.0
        %538 = vmatmul.mubr.f32.gmra.mxu0 %v384
        %v539 = vpop.f32.mrf.mxu0
        %v540 = vadd.f32 0.0, %v539
        %v541 = vpop.f32.mrf.mxu0
        %v542 = vadd.f32 0.0, %v541
        %543 = vmatprep.mubr.f32.mxu0 0.0
        %544 = vmatmul.mubr.f32.gmra.mxu0 %v385
        %v545 = vpop.f32.mrf.mxu0
        %v546 = vadd.f32 0.0, %v545
        %v547 = vpop.f32.mrf.mxu0
        %v548 = vadd.f32 0.0, %v547
        %549 = vmatprep.mubr.f32.mxu0 0.0
        %550 = vmatmul.mubr.f32.gmra.mxu0 %v386
        %v551 = vpop.f32.mrf.mxu0
        %v552 = vadd.f32 0.0, %v551
        %v553 = vpop.f32.mrf.mxu0
        %v554 = vadd.f32 0.0, %v553
        %555 = vmatprep.mubr.f32.mxu0 0.0
        %556 = vmatmul.mubr.f32.gmra.mxu0 %v387
        %v557 = vpop.f32.mrf.mxu0
        %v558 = vadd.f32 0.0, %v557
        %v559 = vpop.f32.mrf.mxu0
        %v560 = vadd.f32 0.0, %v559
        %561 = vmatprep.mubr.f32.mxu0 0.0
        %562 = vmatmul.mubr.f32.gmra.mxu0 %v388
        %v563 = vpop.f32.mrf.mxu0
        %v564 = vadd.f32 0.0, %v563
        %v565 = vpop.f32.mrf.mxu0
        %v566 = vadd.f32 0.0, %v565
        %567 = vmatprep.mubr.f32.mxu0 0.0
        %568 = vmatmul.mubr.f32.gmra.mxu0 %v389
        %v569 = vpop.f32.mrf.mxu0
        %v570 = vadd.f32 0.0, %v569
        %v571 = vpop.f32.mrf.mxu0
        %v572 = vadd.f32 0.0, %v571
        %573 = vmatprep.mubr.f32.mxu0 0.0
        %574 = vmatmul.mubr.f32.gmra.mxu0 %v390
        %v575 = vpop.f32.mrf.mxu0
        %v576 = vadd.f32 0.0, %v575
        %v577 = vpop.f32.mrf.mxu0
        %v578 = vadd.f32 0.0, %v577
        %579 = vmatprep.mubr.f32.mxu0 0.0
        %580 = vmatmul.mubr.f32.gmra.mxu0 %v391
        %v581 = vpop.f32.mrf.mxu0
        %v582 = vadd.f32 0.0, %v581
        %v583 = vpop.f32.mrf.mxu0
        %v584 = vadd.f32 0.0, %v583
        %585 = vmatprep.mubr.f32.mxu0 0.0
        %586 = vmatmul.mubr.f32.gmra.mxu0 %v392
        %v587 = vpop.f32.mrf.mxu0
        %v588 = vadd.f32 0.0, %v587
        %v589 = vpop.f32.mrf.mxu0
        %v590 = vadd.f32 0.0, %v589
        %591 = vmatprep.mubr.f32.mxu0 0.0
        %592 = vmatmul.mubr.f32.gmra.mxu0 %v393
        %v593 = vpop.f32.mrf.mxu0
        %v594 = vadd.f32 0.0, %v593
        %v595 = vpop.f32.mrf.mxu0
        %v596 = vadd.f32 0.0, %v595
        %597 = vmatprep.mubr.f32.mxu0 0.0
        %598 = vmatmul.mubr.f32.gmra.mxu0 %v394
        %v599 = vpop.f32.mrf.mxu0
        %v600 = vadd.f32 0.0, %v599
        %v601 = vpop.f32.mrf.mxu0
        %v602 = vadd.f32 0.0, %v601
        %603 = vdwg.mxu0
        %604 = vmatprep.subr.mxu0 0.0
        %605 = vmatpush1.msra.mxu0 %v442
        %606 = vmatprep.subr.mxu0 0.0
        %607 = vmatpush1.msra.mxu0 %v439
        %608 = vmatprep.subr.mxu0 0.0
        %609 = vmatpush1.msra.mxu0 %v436
        %610 = vmatprep.subr.mxu0 0.0
        %611 = vmatpush1.msra.mxu0 %v433
        %612 = vmatprep.subr.mxu0 0.0
        %613 = vmatpush1.msra.mxu0 %v430
        %614 = vmatprep.subr.mxu0 0.0
        %615 = vmatpush1.msra.mxu0 %v427
        %616 = vmatprep.subr.mxu0 0.0
        %617 = vmatpush1.msra.mxu0 %v424
        %618 = vmatprep.subr.mxu0 0.0
        %619 = vmatpush1.msra.mxu0 %v421
        %620 = vmatprep.subr.mxu0 0.0
        %621 = vmatpush1.msra.mxu0 %v418
        %622 = vmatprep.subr.mxu0 0.0
        %623 = vmatpush1.msra.mxu0 %v415
        %624 = vmatprep.subr.mxu0 0.0
        %625 = vmatpush1.msra.mxu0 %v412
        %626 = vmatprep.subr.mxu0 0.0
        %627 = vmatpush1.msra.mxu0 %v409
        %628 = vmatprep.subr.mxu0 0.0
        %629 = vmatpush1.msra.mxu0 %v406
        %630 = vmatprep.subr.mxu0 0.0
        %631 = vmatpush1.msra.mxu0 %v403
        %632 = vmatprep.subr.mxu0 0.0
        %633 = vmatpush1.msra.mxu0 %v400
        %634 = vmatprep.subr.mxu0 0.0
        %635 = vmatpush1.msra.mxu0 %v397
        %636 = vmatprep.subr.mxu0 0.0
        %637 = vmatpush2.msra.mxu0 0.0
        %638 = vmatprep.subr.mxu0 0.0
        %639 = vmatpush2.msra.mxu0 0.0
        %640 = vmatprep.subr.mxu0 0.0
        %641 = vmatpush2.msra.mxu0 0.0
        %642 = vmatprep.subr.mxu0 0.0
        %643 = vmatpush2.msra.mxu0 0.0
        %644 = vmatprep.subr.mxu0 0.0
        %645 = vmatpush2.msra.mxu0 0.0
        %646 = vmatprep.subr.mxu0 0.0
        %647 = vmatpush2.msra.mxu0 0.0
        %648 = vmatprep.subr.mxu0 0.0
        %649 = vmatpush2.msra.mxu0 0.0
        %650 = vmatprep.subr.mxu0 0.0
        %651 = vmatpush2.msra.mxu0 0.0
        %652 = vmatprep.subr.mxu0 0.0
        %653 = vmatpush2.msra.mxu0 0.0
        %654 = vmatprep.subr.mxu0 0.0
        %655 = vmatpush2.msra.mxu0 0.0
        %656 = vmatprep.subr.mxu0 0.0
        %657 = vmatpush2.msra.mxu0 0.0
        %658 = vmatprep.subr.mxu0 0.0
        %659 = vmatpush2.msra.mxu0 0.0
        %660 = vmatprep.subr.mxu0 0.0
        %661 = vmatpush2.msra.mxu0 0.0
        %662 = vmatprep.subr.mxu0 0.0
        %663 = vmatpush2.msra.mxu0 0.0
        %664 = vmatprep.subr.mxu0 0.0
        %665 = vmatpush2.msra.mxu0 0.0
        %666 = vmatprep.subr.mxu0 0.0
        %667 = vmatpush2.msra.mxu0 0.0
        %668 = vmatprep.mubr.f32.mxu0 0.0
        %669 = vmatmul.mubr.f32.gmra.mxu0 %v379
        %v670 = vpop.f32.mrf.mxu0
        %v671 = vadd.f32 0.0, %v670
        %v672 = vpop.f32.mrf.mxu0
        %673 = vmatprep.mubr.f32.mxu0 0.0
        %674 = vmatmul.mubr.f32.gmra.mxu0 %v380
        %v675 = vpop.f32.mrf.mxu0
        %v676 = vadd.f32 0.0, %v675
        %v677 = vpop.f32.mrf.mxu0
        %678 = vmatprep.mubr.f32.mxu0 0.0
        %679 = vmatmul.mubr.f32.gmra.mxu0 %v381
        %v680 = vpop.f32.mrf.mxu0
        %v681 = vadd.f32 0.0, %v680
        %v682 = vpop.f32.mrf.mxu0
        %683 = vmatprep.mubr.f32.mxu0 0.0
        %684 = vmatmul.mubr.f32.gmra.mxu0 %v382
        %v685 = vpop.f32.mrf.mxu0
        %v686 = vadd.f32 0.0, %v685
        %v687 = vpop.f32.mrf.mxu0
        %688 = vmatprep.mubr.f32.mxu0 0.0
        %689 = vmatmul.mubr.f32.gmra.mxu0 %v383
        %v690 = vpop.f32.mrf.mxu0
        %v691 = vadd.f32 0.0, %v690
        %v692 = vpop.f32.mrf.mxu0
        %693 = vmatprep.mubr.f32.mxu0 0.0
        %694 = vmatmul.mubr.f32.gmra.mxu0 %v384
        %v695 = vpop.f32.mrf.mxu0
        %v696 = vadd.f32 0.0, %v695
        %v697 = vpop.f32.mrf.mxu0
        %698 = vmatprep.mubr.f32.mxu0 0.0
        %699 = vmatmul.mubr.f32.gmra.mxu0 %v385
        %v700 = vpop.f32.mrf.mxu0
        %v701 = vadd.f32 0.0, %v700
        %v702 = vpop.f32.mrf.mxu0
        %703 = vmatprep.mubr.f32.mxu0 0.0
        %704 = vmatmul.mubr.f32.gmra.mxu0 %v386
        %v705 = vpop.f32.mrf.mxu0
        %v706 = vadd.f32 0.0, %v705
        %v707 = vpop.f32.mrf.mxu0
        %708 = vmatprep.mubr.f32.mxu0 0.0
        %709 = vmatmul.mubr.f32.gmra.mxu0 %v387
        %v710 = vpop.f32.mrf.mxu0
        %v711 = vadd.f32 0.0, %v710
        %v712 = vpop.f32.mrf.mxu0
        %713 = vmatprep.mubr.f32.mxu0 0.0
        %714 = vmatmul.mubr.f32.gmra.mxu0 %v388
        %v715 = vpop.f32.mrf.mxu0
        %v716 = vadd.f32 0.0, %v715
        %v717 = vpop.f32.mrf.mxu0
        %718 = vmatprep.mubr.f32.mxu0 0.0
        %719 = vmatmul.mubr.f32.gmra.mxu0 %v389
        %v720 = vpop.f32.mrf.mxu0
        %v721 = vadd.f32 0.0, %v720
        %v722 = vpop.f32.mrf.mxu0
        %723 = vmatprep.mubr.f32.mxu0 0.0
        %724 = vmatmul.mubr.f32.gmra.mxu0 %v390
        %v725 = vpop.f32.mrf.mxu0
        %v726 = vadd.f32 0.0, %v725
        %v727 = vpop.f32.mrf.mxu0
        %728 = vmatprep.mubr.f32.mxu0 0.0
        %729 = vmatmul.mubr.f32.gmra.mxu0 %v391
        %v730 = vpop.f32.mrf.mxu0
        %v731 = vadd.f32 0.0, %v730
        %v732 = vpop.f32.mrf.mxu0
        %733 = vmatprep.mubr.f32.mxu0 0.0
        %734 = vmatmul.mubr.f32.gmra.mxu0 %v392
        %v735 = vpop.f32.mrf.mxu0
        %v736 = vadd.f32 0.0, %v735
        %v737 = vpop.f32.mrf.mxu0
        %738 = vmatprep.mubr.f32.mxu0 0.0
        %739 = vmatmul.mubr.f32.gmra.mxu0 %v393
        %v740 = vpop.f32.mrf.mxu0
        %v741 = vadd.f32 0.0, %v740
        %v742 = vpop.f32.mrf.mxu0
        %743 = vmatprep.mubr.f32.mxu0 0.0
        %744 = vmatmul.mubr.f32.gmra.mxu0 %v394
        %v745 = vpop.f32.mrf.mxu0
        %v746 = vadd.f32 0.0, %v745
        %v747 = vpop.f32.mrf.mxu0
        %748 = vdwg.mxu0
        %v749 = vld [vmem:[%s322] sm:$0xff]
        %v750 = vld [vmem:[%s322 + $0x8] sm:$0xff]
        %v751 = vld [vmem:[%s322 + $0x10] sm:$0xff]
        %v752 = vld [vmem:[%s322 + $0x18] sm:$0xff]
        %v753 = vld [vmem:[%s322 + $0x20] sm:$0xff]
        %v754 = vld [vmem:[%s322 + $0x28] sm:$0xff]
        %v755 = vld [vmem:[%s322 + $0x30] sm:$0xff]
        %v756 = vld [vmem:[%s322 + $0x38] sm:$0xff]
        %v757 = vld [vmem:[%s322 + $0x40] sm:$0xff]
        %v758 = vld [vmem:[%s322 + $0x48] sm:$0xff]
        %v759 = vld [vmem:[%s322 + $0x50] sm:$0xff]
        %v760 = vld [vmem:[%s322 + $0x58] sm:$0xff]
        %v761 = vld [vmem:[%s322 + $0x60] sm:$0xff]
        %v762 = vld [vmem:[%s322 + $0x68] sm:$0xff]
        %v763 = vld [vmem:[%s322 + $0x70] sm:$0xff]
        %v764 = vld [vmem:[%s322 + $0x78] sm:$0xff]
        %v765 = vld [vmem:[%s322 + $0x80] sm:$0xff]
        %v766 = vld [vmem:[%s322 + $0x88] sm:$0xff]
        %v767 = vld [vmem:[%s322 + $0x90] sm:$0xff]
        %v768 = vld [vmem:[%s322 + $0x98] sm:$0xff]
        %v769 = vld [vmem:[%s322 + $0xa0] sm:$0xff]
        %v770 = vld [vmem:[%s322 + $0xa8] sm:$0xff]
        %v771 = vld [vmem:[%s322 + $0xb0] sm:$0xff]
        %v772 = vld [vmem:[%s322 + $0xb8] sm:$0xff]
        %v773 = vld [vmem:[%s322 + $0xc0] sm:$0xff]
        %v774 = vld [vmem:[%s322 + $0xc8] sm:$0xff]
        %v775 = vld [vmem:[%s322 + $0xd0] sm:$0xff]
        %v776 = vld [vmem:[%s322 + $0xd8] sm:$0xff]
        %v777 = vld [vmem:[%s322 + $0xe0] sm:$0xff]
        %v778 = vld [vmem:[%s322 + $0xe8] sm:$0xff]
        %v779 = vld [vmem:[%s322 + $0xf0] sm:$0xff]
        %v780 = vld [vmem:[%s322 + $0xf8] sm:$0xff]
        %v781 = vld [vmem:[%s322 + $0x100] sm:$0xff]
        %v782 = vld [vmem:[%s322 + $0x108] sm:$0xff]
        %v783 = vld [vmem:[%s322 + $0x110] sm:$0xff]
        %v784 = vld [vmem:[%s322 + $0x118] sm:$0xff]
        %v785 = vld [vmem:[%s322 + $0x120] sm:$0xff]
        %v786 = vld [vmem:[%s322 + $0x128] sm:$0xff]
        %v787 = vld [vmem:[%s322 + $0x130] sm:$0xff]
        %v788 = vld [vmem:[%s322 + $0x138] sm:$0xff]
        %v789 = vld [vmem:[%s322 + $0x140] sm:$0xff]
        %v790 = vld [vmem:[%s322 + $0x148] sm:$0xff]
        %v791 = vld [vmem:[%s322 + $0x150] sm:$0xff]
        %v792 = vld [vmem:[%s322 + $0x158] sm:$0xff]
        %v793 = vld [vmem:[%s322 + $0x160] sm:$0xff]
        %v794 = vld [vmem:[%s322 + $0x168] sm:$0xff]
        %v795 = vld [vmem:[%s322 + $0x170] sm:$0xff]
        %v796 = vld [vmem:[%s322 + $0x178] sm:$0xff]
        %797 = vmatprep.subr.mxu0 %v795
        %798 = vmatpush1.msra.mxu0 %v794
        %799 = vmatprep.subr.mxu0 %v792
        %800 = vmatpush1.msra.mxu0 %v791
        %801 = vmatprep.subr.mxu0 %v789
        %802 = vmatpush1.msra.mxu0 %v788
        %803 = vmatprep.subr.mxu0 %v786
        %804 = vmatpush1.msra.mxu0 %v785
        %805 = vmatprep.subr.mxu0 %v783
        %806 = vmatpush1.msra.mxu0 %v782
        %807 = vmatprep.subr.mxu0 %v780
        %808 = vmatpush1.msra.mxu0 %v779
        %809 = vmatprep.subr.mxu0 %v777
        %810 = vmatpush1.msra.mxu0 %v776
        %811 = vmatprep.subr.mxu0 %v774
        %812 = vmatpush1.msra.mxu0 %v773
        %813 = vmatprep.subr.mxu0 %v771
        %814 = vmatpush1.msra.mxu0 %v770
        %815 = vmatprep.subr.mxu0 %v768
        %816 = vmatpush1.msra.mxu0 %v767
        %817 = vmatprep.subr.mxu0 %v765
        %818 = vmatpush1.msra.mxu0 %v764
        %819 = vmatprep.subr.mxu0 %v762
        %820 = vmatpush1.msra.mxu0 %v761
        %821 = vmatprep.subr.mxu0 %v759
        %822 = vmatpush1.msra.mxu0 %v758
        %823 = vmatprep.subr.mxu0 %v756
        %824 = vmatpush1.msra.mxu0 %v755
        %825 = vmatprep.subr.mxu0 %v753
        %826 = vmatpush1.msra.mxu0 %v752
        %827 = vmatprep.subr.mxu0 %v750
        %828 = vmatpush1.msra.mxu0 %v749
        %829 = vmatprep.subr.mxu0 0.0
        %830 = vmatpush2.msra.mxu0 0.0
        %831 = vmatprep.subr.mxu0 0.0
        %832 = vmatpush2.msra.mxu0 0.0
        %833 = vmatprep.subr.mxu0 0.0
        %834 = vmatpush2.msra.mxu0 0.0
        %835 = vmatprep.subr.mxu0 0.0
        %836 = vmatpush2.msra.mxu0 0.0
        %837 = vmatprep.subr.mxu0 0.0
        %838 = vmatpush2.msra.mxu0 0.0
        %839 = vmatprep.subr.mxu0 0.0
        %840 = vmatpush2.msra.mxu0 0.0
        %841 = vmatprep.subr.mxu0 0.0
        %842 = vmatpush2.msra.mxu0 0.0
        %843 = vmatprep.subr.mxu0 0.0
        %844 = vmatpush2.msra.mxu0 0.0
        %845 = vmatprep.subr.mxu0 0.0
        %846 = vmatpush2.msra.mxu0 0.0
        %847 = vmatprep.subr.mxu0 0.0
        %848 = vmatpush2.msra.mxu0 0.0
        %849 = vmatprep.subr.mxu0 0.0
        %850 = vmatpush2.msra.mxu0 0.0
        %851 = vmatprep.subr.mxu0 0.0
        %852 = vmatpush2.msra.mxu0 0.0
        %853 = vmatprep.subr.mxu0 0.0
        %854 = vmatpush2.msra.mxu0 0.0
        %855 = vmatprep.subr.mxu0 0.0
        %856 = vmatpush2.msra.mxu0 0.0
        %857 = vmatprep.subr.mxu0 0.0
        %858 = vmatpush2.msra.mxu0 0.0
        %859 = vmatprep.subr.mxu0 0.0
        %860 = vmatpush2.msra.mxu0 0.0
        %861 = vmatprep.mubr.f32.mxu0 0.0
        %862 = vmatmul.mubr.f32.gmra.mxu0 %v379
        %v863 = vpop.f32.mrf.mxu0
        %v864 = vadd.f32 0.0, %v863
        %v865 = vpop.f32.mrf.mxu0
        %v866 = vadd.f32 0.0, %v865
        %867 = vmatprep.mubr.f32.mxu0 0.0
        %868 = vmatmul.mubr.f32.gmra.mxu0 %v380
        %v869 = vpop.f32.mrf.mxu0
        %v870 = vadd.f32 0.0, %v869
        %v871 = vpop.f32.mrf.mxu0
        %v872 = vadd.f32 0.0, %v871
        %873 = vmatprep.mubr.f32.mxu0 0.0
        %874 = vmatmul.mubr.f32.gmra.mxu0 %v381
        %v875 = vpop.f32.mrf.mxu0
        %v876 = vadd.f32 0.0, %v875
        %v877 = vpop.f32.mrf.mxu0
        %v878 = vadd.f32 0.0, %v877
        %879 = vmatprep.mubr.f32.mxu0 0.0
        %880 = vmatmul.mubr.f32.gmra.mxu0 %v382
        %v881 = vpop.f32.mrf.mxu0
        %v882 = vadd.f32 0.0, %v881
        %v883 = vpop.f32.mrf.mxu0
        %v884 = vadd.f32 0.0, %v883
        %885 = vmatprep.mubr.f32.mxu0 0.0
        %886 = vmatmul.mubr.f32.gmra.mxu0 %v383
        %v887 = vpop.f32.mrf.mxu0
        %v888 = vadd.f32 0.0, %v887
        %v889 = vpop.f32.mrf.mxu0
        %v890 = vadd.f32 0.0, %v889
        %891 = vmatprep.mubr.f32.mxu0 0.0
        %892 = vmatmul.mubr.f32.gmra.mxu0 %v384
        %v893 = vpop.f32.mrf.mxu0
        %v894 = vadd.f32 0.0, %v893
        %v895 = vpop.f32.mrf.mxu0
        %v896 = vadd.f32 0.0, %v895
        %897 = vmatprep.mubr.f32.mxu0 0.0
        %898 = vmatmul.mubr.f32.gmra.mxu0 %v385
        %v899 = vpop.f32.mrf.mxu0
        %v900 = vadd.f32 0.0, %v899
        %v901 = vpop.f32.mrf.mxu0
        %v902 = vadd.f32 0.0, %v901
        %903 = vmatprep.mubr.f32.mxu0 0.0
        %904 = vmatmul.mubr.f32.gmra.mxu0 %v386
        %v905 = vpop.f32.mrf.mxu0
        %v906 = vadd.f32 0.0, %v905
        %v907 = vpop.f32.mrf.mxu0
        %v908 = vadd.f32 0.0, %v907
        %909 = vmatprep.mubr.f32.mxu0 0.0
        %910 = vmatmul.mubr.f32.gmra.mxu0 %v387
        %v911 = vpop.f32.mrf.mxu0
        %v912 = vadd.f32 0.0, %v911
        %v913 = vpop.f32.mrf.mxu0
        %v914 = vadd.f32 0.0, %v913
        %915 = vmatprep.mubr.f32.mxu0 0.0
        %916 = vmatmul.mubr.f32.gmra.mxu0 %v388
        %v917 = vpop.f32.mrf.mxu0
        %v918 = vadd.f32 0.0, %v917
        %v919 = vpop.f32.mrf.mxu0
        %v920 = vadd.f32 0.0, %v919
        %921 = vmatprep.mubr.f32.mxu0 0.0
        %922 = vmatmul.mubr.f32.gmra.mxu0 %v389
        %v923 = vpop.f32.mrf.mxu0
        %v924 = vadd.f32 0.0, %v923
        %v925 = vpop.f32.mrf.mxu0
        %v926 = vadd.f32 0.0, %v925
        %927 = vmatprep.mubr.f32.mxu0 0.0
        %928 = vmatmul.mubr.f32.gmra.mxu0 %v390
        %v929 = vpop.f32.mrf.mxu0
        %v930 = vadd.f32 0.0, %v929
        %v931 = vpop.f32.mrf.mxu0
        %v932 = vadd.f32 0.0, %v931
        %933 = vmatprep.mubr.f32.mxu0 0.0
        %934 = vmatmul.mubr.f32.gmra.mxu0 %v391
        %v935 = vpop.f32.mrf.mxu0
        %v936 = vadd.f32 0.0, %v935
        %v937 = vpop.f32.mrf.mxu0
        %v938 = vadd.f32 0.0, %v937
        %939 = vmatprep.mubr.f32.mxu0 0.0
        %940 = vmatmul.mubr.f32.gmra.mxu0 %v392
        %v941 = vpop.f32.mrf.mxu0
        %v942 = vadd.f32 0.0, %v941
        %v943 = vpop.f32.mrf.mxu0
        %v944 = vadd.f32 0.0, %v943
        %945 = vmatprep.mubr.f32.mxu0 0.0
        %946 = vmatmul.mubr.f32.gmra.mxu0 %v393
        %v947 = vpop.f32.mrf.mxu0
        %v948 = vadd.f32 0.0, %v947
        %v949 = vpop.f32.mrf.mxu0
        %v950 = vadd.f32 0.0, %v949
        %951 = vmatprep.mubr.f32.mxu0 0.0
        %952 = vmatmul.mubr.f32.gmra.mxu0 %v394
        %v953 = vpop.f32.mrf.mxu0
        %v954 = vadd.f32 0.0, %v953
        %v955 = vpop.f32.mrf.mxu0
        %v956 = vadd.f32 0.0, %v955
        %957 = vdwg.mxu0
        %958 = vmatprep.subr.mxu0 0.0
        %959 = vmatpush1.msra.mxu0 %v796
        %960 = vmatprep.subr.mxu0 0.0
        %961 = vmatpush1.msra.mxu0 %v793
        %962 = vmatprep.subr.mxu0 0.0
        %963 = vmatpush1.msra.mxu0 %v790
        %964 = vmatprep.subr.mxu0 0.0
        %965 = vmatpush1.msra.mxu0 %v787
        %966 = vmatprep.subr.mxu0 0.0
        %967 = vmatpush1.msra.mxu0 %v784
        %968 = vmatprep.subr.mxu0 0.0
        %969 = vmatpush1.msra.mxu0 %v781
        %970 = vmatprep.subr.mxu0 0.0
        %971 = vmatpush1.msra.mxu0 %v778
        %972 = vmatprep.subr.mxu0 0.0
        %973 = vmatpush1.msra.mxu0 %v775
        %974 = vmatprep.subr.mxu0 0.0
        %975 = vmatpush1.msra.mxu0 %v772
        %976 = vmatprep.subr.mxu0 0.0
        %977 = vmatpush1.msra.mxu0 %v769
        %978 = vmatprep.subr.mxu0 0.0
        %979 = vmatpush1.msra.mxu0 %v766
        %980 = vmatprep.subr.mxu0 0.0
        %981 = vmatpush1.msra.mxu0 %v763
        %982 = vmatprep.subr.mxu0 0.0
        %983 = vmatpush1.msra.mxu0 %v760
        %984 = vmatprep.subr.mxu0 0.0
        %985 = vmatpush1.msra.mxu0 %v757
        %986 = vmatprep.subr.mxu0 0.0
        %987 = vmatpush1.msra.mxu0 %v754
        %988 = vmatprep.subr.mxu0 0.0
        %989 = vmatpush1.msra.mxu0 %v751
        %990 = vmatprep.subr.mxu0 0.0
        %991 = vmatpush2.msra.mxu0 0.0
        %992 = vmatprep.subr.mxu0 0.0
        %993 = vmatpush2.msra.mxu0 0.0
        %994 = vmatprep.subr.mxu0 0.0
        %995 = vmatpush2.msra.mxu0 0.0
        %996 = vmatprep.subr.mxu0 0.0
        %997 = vmatpush2.msra.mxu0 0.0
        %998 = vmatprep.subr.mxu0 0.0
        %999 = vmatpush2.msra.mxu0 0.0
        %1000 = vmatprep.subr.mxu0 0.0
        %1001 = vmatpush2.msra.mxu0 0.0
        %1002 = vmatprep.subr.mxu0 0.0
        %1003 = vmatpush2.msra.mxu0 0.0
        %1004 = vmatprep.subr.mxu0 0.0
        %1005 = vmatpush2.msra.mxu0 0.0
        %1006 = vmatprep.subr.mxu0 0.0
        %1007 = vmatpush2.msra.mxu0 0.0
        %1008 = vmatprep.subr.mxu0 0.0
        %1009 = vmatpush2.msra.mxu0 0.0
        %1010 = vmatprep.subr.mxu0 0.0
        %1011 = vmatpush2.msra.mxu0 0.0
        %1012 = vmatprep.subr.mxu0 0.0
        %1013 = vmatpush2.msra.mxu0 0.0
        %1014 = vmatprep.subr.mxu0 0.0
        %1015 = vmatpush2.msra.mxu0 0.0
        %1016 = vmatprep.subr.mxu0 0.0
        %1017 = vmatpush2.msra.mxu0 0.0
        %1018 = vmatprep.subr.mxu0 0.0
        %1019 = vmatpush2.msra.mxu0 0.0
        %1020 = vmatprep.subr.mxu0 0.0
        %1021 = vmatpush2.msra.mxu0 0.0
        %1022 = vmatprep.mubr.f32.mxu0 0.0
        %1023 = vmatmul.mubr.f32.gmra.mxu0 %v379
        %v1024 = vpop.f32.mrf.mxu0
        %v1025 = vadd.f32 0.0, %v1024
        %v1026 = vpop.f32.mrf.mxu0
        %1027 = vmatprep.mubr.f32.mxu0 0.0
        %1028 = vmatmul.mubr.f32.gmra.mxu0 %v380
        %v1029 = vpop.f32.mrf.mxu0
        %v1030 = vadd.f32 0.0, %v1029
        %v1031 = vpop.f32.mrf.mxu0
        %1032 = vmatprep.mubr.f32.mxu0 0.0
        %1033 = vmatmul.mubr.f32.gmra.mxu0 %v381
        %v1034 = vpop.f32.mrf.mxu0
        %v1035 = vadd.f32 0.0, %v1034
        %v1036 = vpop.f32.mrf.mxu0
        %1037 = vmatprep.mubr.f32.mxu0 0.0
        %1038 = vmatmul.mubr.f32.gmra.mxu0 %v382
        %v1039 = vpop.f32.mrf.mxu0
        %v1040 = vadd.f32 0.0, %v1039
        %v1041 = vpop.f32.mrf.mxu0
        %1042 = vmatprep.mubr.f32.mxu0 0.0
        %1043 = vmatmul.mubr.f32.gmra.mxu0 %v383
        %v1044 = vpop.f32.mrf.mxu0
        %v1045 = vadd.f32 0.0, %v1044
        %v1046 = vpop.f32.mrf.mxu0
        %1047 = vmatprep.mubr.f32.mxu0 0.0
        %1048 = vmatmul.mubr.f32.gmra.mxu0 %v384
        %v1049 = vpop.f32.mrf.mxu0
        %v1050 = vadd.f32 0.0, %v1049
        %v1051 = vpop.f32.mrf.mxu0
        %1052 = vmatprep.mubr.f32.mxu0 0.0
        %1053 = vmatmul.mubr.f32.gmra.mxu0 %v385
        %v1054 = vpop.f32.mrf.mxu0
        %v1055 = vadd.f32 0.0, %v1054
        %v1056 = vpop.f32.mrf.mxu0
        %1057 = vmatprep.mubr.f32.mxu0 0.0
        %1058 = vmatmul.mubr.f32.gmra.mxu0 %v386
        %v1059 = vpop.f32.mrf.mxu0
        %v1060 = vadd.f32 0.0, %v1059
        %v1061 = vpop.f32.mrf.mxu0
        %1062 = vmatprep.mubr.f32.mxu0 0.0
        %1063 = vmatmul.mubr.f32.gmra.mxu0 %v387
        %v1064 = vpop.f32.mrf.mxu0
        %v1065 = vadd.f32 0.0, %v1064
        %v1066 = vpop.f32.mrf.mxu0
        %1067 = vmatprep.mubr.f32.mxu0 0.0
        %1068 = vmatmul.mubr.f32.gmra.mxu0 %v388
        %v1069 = vpop.f32.mrf.mxu0
        %v1070 = vadd.f32 0.0, %v1069
        %v1071 = vpop.f32.mrf.mxu0
        %1072 = vmatprep.mubr.f32.mxu0 0.0
        %1073 = vmatmul.mubr.f32.gmra.mxu0 %v389
        %v1074 = vpop.f32.mrf.mxu0
        %v1075 = vadd.f32 0.0, %v1074
        %v1076 = vpop.f32.mrf.mxu0
        %1077 = vmatprep.mubr.f32.mxu0 0.0
        %1078 = vmatmul.mubr.f32.gmra.mxu0 %v390
        %v1079 = vpop.f32.mrf.mxu0
        %v1080 = vadd.f32 0.0, %v1079
        %v1081 = vpop.f32.mrf.mxu0
        %1082 = vmatprep.mubr.f32.mxu0 0.0
        %1083 = vmatmul.mubr.f32.gmra.mxu0 %v391
        %v1084 = vpop.f32.mrf.mxu0
        %v1085 = vadd.f32 0.0, %v1084
        %v1086 = vpop.f32.mrf.mxu0
        %1087 = vmatprep.mubr.f32.mxu0 0.0
        %1088 = vmatmul.mubr.f32.gmra.mxu0 %v392
        %v1089 = vpop.f32.mrf.mxu0
        %v1090 = vadd.f32 0.0, %v1089
        %v1091 = vpop.f32.mrf.mxu0
        %1092 = vmatprep.mubr.f32.mxu0 0.0
        %1093 = vmatmul.mubr.f32.gmra.mxu0 %v393
        %v1094 = vpop.f32.mrf.mxu0
        %v1095 = vadd.f32 0.0, %v1094
        %v1096 = vpop.f32.mrf.mxu0
        %1097 = vmatprep.mubr.f32.mxu0 0.0
        %1098 = vmatmul.mubr.f32.gmra.mxu0 %v394
        %v1099 = vpop.f32.mrf.mxu0
        %v1100 = vadd.f32 0.0, %v1099
        %v1101 = vpop.f32.mrf.mxu0
        %1102 = vdwg.mxu0
        %v1103 = vxor.u32 %v510, 2147483648
        %v1104 = vxor.u32 %v512, 2147483648
        %v1105 = vxor.u32 %v671, 2147483648
        %v1106 = vxor.u32 %v516, 2147483648
        %v1107 = vxor.u32 %v518, 2147483648
        %v1108 = vxor.u32 %v676, 2147483648
        %v1109 = vxor.u32 %v522, 2147483648
        %v1110 = vxor.u32 %v524, 2147483648
        %v1111 = vxor.u32 %v681, 2147483648
        %v1112 = vxor.u32 %v528, 2147483648
        %v1113 = vxor.u32 %v530, 2147483648
        %v1114 = vxor.u32 %v686, 2147483648
        %v1115 = vxor.u32 %v534, 2147483648
        %v1116 = vxor.u32 %v536, 2147483648
        %v1117 = vxor.u32 %v691, 2147483648
        %v1118 = vxor.u32 %v540, 2147483648
        %v1119 = vxor.u32 %v542, 2147483648
        %v1120 = vxor.u32 %v696, 2147483648
        %v1121 = vxor.u32 %v546, 2147483648
        %v1122 = vxor.u32 %v548, 2147483648
        %v1123 = vxor.u32 %v701, 2147483648
        %v1124 = vxor.u32 %v552, 2147483648
        %v1125 = vxor.u32 %v554, 2147483648
        %v1126 = vxor.u32 %v706, 2147483648
        %v1127 = vxor.u32 %v558, 2147483648
        %v1128 = vxor.u32 %v560, 2147483648
        %v1129 = vxor.u32 %v711, 2147483648
        %v1130 = vxor.u32 %v564, 2147483648
        %v1131 = vxor.u32 %v566, 2147483648
        %v1132 = vxor.u32 %v716, 2147483648
        %v1133 = vxor.u32 %v570, 2147483648
        %v1134 = vxor.u32 %v572, 2147483648
        %v1135 = vxor.u32 %v721, 2147483648
        %v1136 = vxor.u32 %v576, 2147483648
        %v1137 = vxor.u32 %v578, 2147483648
        %v1138 = vxor.u32 %v726, 2147483648
        %v1139 = vxor.u32 %v582, 2147483648
        %v1140 = vxor.u32 %v584, 2147483648
        %v1141 = vxor.u32 %v731, 2147483648
        %v1142 = vxor.u32 %v588, 2147483648
        %v1143 = vxor.u32 %v590, 2147483648
        %v1144 = vxor.u32 %v736, 2147483648
        %v1145 = vxor.u32 %v594, 2147483648
        %v1146 = vxor.u32 %v596, 2147483648
        %v1147 = vxor.u32 %v741, 2147483648
        %v1148 = vxor.u32 %v600, 2147483648
        %v1149 = vxor.u32 %v602, 2147483648
        %v1150 = vxor.u32 %v746, 2147483648
        %v1151 = vmul.f32 %v1103, 1.442695
        %v1152 = vpow.pop %v1151
        %v1153 = vmul.f32 %v1104, 1.442695
        %v1154 = vpow.pop %v1153
        %v1155 = vmul.f32 %v1105, 1.442695
        %v1156 = vpow.pop %v1155
        %v1157 = vmul.f32 %v1106, 1.442695
        %v1158 = vpow.pop %v1157
        %v1159 = vmul.f32 %v1107, 1.442695
        %v1160 = vpow.pop %v1159
        %v1161 = vmul.f32 %v1108, 1.442695
        %v1162 = vpow.pop %v1161
        %v1163 = vmul.f32 %v1109, 1.442695
        %v1164 = vpow.pop %v1163
        %v1165 = vmul.f32 %v1110, 1.442695
        %v1166 = vpow.pop %v1165
        %v1167 = vmul.f32 %v1111, 1.442695
        %v1168 = vpow.pop %v1167
        %v1169 = vmul.f32 %v1112, 1.442695
        %v1170 = vpow.pop %v1169
        %v1171 = vmul.f32 %v1113, 1.442695
        %v1172 = vpow.pop %v1171
        %v1173 = vmul.f32 %v1114, 1.442695
        %v1174 = vpow.pop %v1173
        %v1175 = vmul.f32 %v1115, 1.442695
        %v1176 = vpow.pop %v1175
        %v1177 = vmul.f32 %v1116, 1.442695
        %v1178 = vpow.pop %v1177
        %v1179 = vmul.f32 %v1117, 1.442695
        %v1180 = vpow.pop %v1179
        %v1181 = vmul.f32 %v1118, 1.442695
        %v1182 = vpow.pop %v1181
        %v1183 = vmul.f32 %v1119, 1.442695
        %v1184 = vpow.pop %v1183
        %v1185 = vmul.f32 %v1120, 1.442695
        %v1186 = vpow.pop %v1185
        %v1187 = vmul.f32 %v1121, 1.442695
        %v1188 = vpow.pop %v1187
        %v1189 = vmul.f32 %v1122, 1.442695
        %v1190 = vpow.pop %v1189
        %v1191 = vmul.f32 %v1123, 1.442695
        %v1192 = vpow.pop %v1191
        %v1193 = vmul.f32 %v1124, 1.442695
        %v1194 = vpow.pop %v1193
        %v1195 = vmul.f32 %v1125, 1.442695
        %v1196 = vpow.pop %v1195
        %v1197 = vmul.f32 %v1126, 1.442695
        %v1198 = vpow.pop %v1197
        %v1199 = vmul.f32 %v1127, 1.442695
        %v1200 = vpow.pop %v1199
        %v1201 = vmul.f32 %v1128, 1.442695
        %v1202 = vpow.pop %v1201
        %v1203 = vmul.f32 %v1129, 1.442695
        %v1204 = vpow.pop %v1203
        %v1205 = vmul.f32 %v1130, 1.442695
        %v1206 = vpow.pop %v1205
        %v1207 = vmul.f32 %v1131, 1.442695
        %v1208 = vpow.pop %v1207
        %v1209 = vmul.f32 %v1132, 1.442695
        %v1210 = vpow.pop %v1209
        %v1211 = vmul.f32 %v1133, 1.442695
        %v1212 = vpow.pop %v1211
        %v1213 = vmul.f32 %v1134, 1.442695
        %v1214 = vpow.pop %v1213
        %v1215 = vmul.f32 %v1135, 1.442695
        %v1216 = vpow.pop %v1215
        %v1217 = vmul.f32 %v1136, 1.442695
        %v1218 = vpow.pop %v1217
        %v1219 = vmul.f32 %v1137, 1.442695
        %v1220 = vpow.pop %v1219
        %v1221 = vmul.f32 %v1138, 1.442695
        %v1222 = vpow.pop %v1221
        %v1223 = vmul.f32 %v1139, 1.442695
        %v1224 = vpow.pop %v1223
        %v1225 = vmul.f32 %v1140, 1.442695
        %v1226 = vpow.pop %v1225
        %v1227 = vmul.f32 %v1141, 1.442695
        %v1228 = vpow.pop %v1227
        %v1229 = vmul.f32 %v1142, 1.442695
        %v1230 = vpow.pop %v1229
        %v1231 = vmul.f32 %v1143, 1.442695
        %v1232 = vpow.pop %v1231
        %v1233 = vmul.f32 %v1144, 1.442695
        %v1234 = vpow.pop %v1233
        %v1235 = vmul.f32 %v1145, 1.442695
        %v1236 = vpow.pop %v1235
        %v1237 = vmul.f32 %v1146, 1.442695
        %v1238 = vpow.pop %v1237
        %v1239 = vmul.f32 %v1147, 1.442695
        %v1240 = vpow.pop %v1239
        %v1241 = vmul.f32 %v1148, 1.442695
        %v1242 = vpow.pop %v1241
        %v1243 = vmul.f32 %v1149, 1.442695
        %v1244 = vpow.pop %v1243
        %v1245 = vmul.f32 %v1150, 1.442695
        %v1246 = vpow.pop %v1245
        %v1247 = vadd.f32 %v1152, 1.0
        %v1248 = vadd.f32 %v1154, 1.0
        %v1249 = vadd.f32 %v1156, 1.0
        %v1250 = vadd.f32 %v1158, 1.0
        %v1251 = vadd.f32 %v1160, 1.0
        %v1252 = vadd.f32 %v1162, 1.0
        %v1253 = vadd.f32 %v1164, 1.0
        %v1254 = vadd.f32 %v1166, 1.0
        %v1255 = vadd.f32 %v1168, 1.0
        %v1256 = vadd.f32 %v1170, 1.0
        %v1257 = vadd.f32 %v1172, 1.0
        %v1258 = vadd.f32 %v1174, 1.0
        %v1259 = vadd.f32 %v1176, 1.0
        %v1260 = vadd.f32 %v1178, 1.0
        %v1261 = vadd.f32 %v1180, 1.0
        %v1262 = vadd.f32 %v1182, 1.0
        %v1263 = vadd.f32 %v1184, 1.0
        %v1264 = vadd.f32 %v1186, 1.0
        %v1265 = vadd.f32 %v1188, 1.0
        %v1266 = vadd.f32 %v1190, 1.0
        %v1267 = vadd.f32 %v1192, 1.0
        %v1268 = vadd.f32 %v1194, 1.0
        %v1269 = vadd.f32 %v1196, 1.0
        %v1270 = vadd.f32 %v1198, 1.0
        %v1271 = vadd.f32 %v1200, 1.0
        %v1272 = vadd.f32 %v1202, 1.0
        %v1273 = vadd.f32 %v1204, 1.0
        %v1274 = vadd.f32 %v1206, 1.0
        %v1275 = vadd.f32 %v1208, 1.0
        %v1276 = vadd.f32 %v1210, 1.0
        %v1277 = vadd.f32 %v1212, 1.0
        %v1278 = vadd.f32 %v1214, 1.0
        %v1279 = vadd.f32 %v1216, 1.0
        %v1280 = vadd.f32 %v1218, 1.0
        %v1281 = vadd.f32 %v1220, 1.0
        %v1282 = vadd.f32 %v1222, 1.0
        %v1283 = vadd.f32 %v1224, 1.0
        %v1284 = vadd.f32 %v1226, 1.0
        %v1285 = vadd.f32 %v1228, 1.0
        %v1286 = vadd.f32 %v1230, 1.0
        %v1287 = vadd.f32 %v1232, 1.0
        %v1288 = vadd.f32 %v1234, 1.0
        %v1289 = vadd.f32 %v1236, 1.0
        %v1290 = vadd.f32 %v1238, 1.0
        %v1291 = vadd.f32 %v1240, 1.0
        %v1292 = vadd.f32 %v1242, 1.0
        %v1293 = vadd.f32 %v1244, 1.0
        %v1294 = vadd.f32 %v1246, 1.0
        %v1295 = vrcp.pop %v1247
        %v1296 = vmul.f32 1.0, %v1295
        %v1297 = vrcp.pop %v1248
        %v1298 = vmul.f32 1.0, %v1297
        %v1299 = vrcp.pop %v1249
        %v1300 = vmul.f32 1.0, %v1299
        %v1301 = vrcp.pop %v1250
        %v1302 = vmul.f32 1.0, %v1301
        %v1303 = vrcp.pop %v1251
        %v1304 = vmul.f32 1.0, %v1303
        %v1305 = vrcp.pop %v1252
        %v1306 = vmul.f32 1.0, %v1305
        %v1307 = vrcp.pop %v1253
        %v1308 = vmul.f32 1.0, %v1307
        %v1309 = vrcp.pop %v1254
        %v1310 = vmul.f32 1.0, %v1309
        %v1311 = vrcp.pop %v1255
        %v1312 = vmul.f32 1.0, %v1311
        %v1313 = vrcp.pop %v1256
        %v1314 = vmul.f32 1.0, %v1313
        %v1315 = vrcp.pop %v1257
        %v1316 = vmul.f32 1.0, %v1315
        %v1317 = vrcp.pop %v1258
        %v1318 = vmul.f32 1.0, %v1317
        %v1319 = vrcp.pop %v1259
        %v1320 = vmul.f32 1.0, %v1319
        %v1321 = vrcp.pop %v1260
        %v1322 = vmul.f32 1.0, %v1321
        %v1323 = vrcp.pop %v1261
        %v1324 = vmul.f32 1.0, %v1323
        %v1325 = vrcp.pop %v1262
        %v1326 = vmul.f32 1.0, %v1325
        %v1327 = vrcp.pop %v1263
        %v1328 = vmul.f32 1.0, %v1327
        %v1329 = vrcp.pop %v1264
        %v1330 = vmul.f32 1.0, %v1329
        %v1331 = vrcp.pop %v1265
        %v1332 = vmul.f32 1.0, %v1331
        %v1333 = vrcp.pop %v1266
        %v1334 = vmul.f32 1.0, %v1333
        %v1335 = vrcp.pop %v1267
        %v1336 = vmul.f32 1.0, %v1335
        %v1337 = vrcp.pop %v1268
        %v1338 = vmul.f32 1.0, %v1337
        %v1339 = vrcp.pop %v1269
        %v1340 = vmul.f32 1.0, %v1339
        %v1341 = vrcp.pop %v1270
        %v1342 = vmul.f32 1.0, %v1341
        %v1343 = vrcp.pop %v1271
        %v1344 = vmul.f32 1.0, %v1343
        %v1345 = vrcp.pop %v1272
        %v1346 = vmul.f32 1.0, %v1345
        %v1347 = vrcp.pop %v1273
        %v1348 = vmul.f32 1.0, %v1347
        %v1349 = vrcp.pop %v1274
        %v1350 = vmul.f32 1.0, %v1349
        %v1351 = vrcp.pop %v1275
        %v1352 = vmul.f32 1.0, %v1351
        %v1353 = vrcp.pop %v1276
        %v1354 = vmul.f32 1.0, %v1353
        %v1355 = vrcp.pop %v1277
        %v1356 = vmul.f32 1.0, %v1355
        %v1357 = vrcp.pop %v1278
        %v1358 = vmul.f32 1.0, %v1357
        %v1359 = vrcp.pop %v1279
        %v1360 = vmul.f32 1.0, %v1359
        %v1361 = vrcp.pop %v1280
        %v1362 = vmul.f32 1.0, %v1361
        %v1363 = vrcp.pop %v1281
        %v1364 = vmul.f32 1.0, %v1363
        %v1365 = vrcp.pop %v1282
        %v1366 = vmul.f32 1.0, %v1365
        %v1367 = vrcp.pop %v1283
        %v1368 = vmul.f32 1.0, %v1367
        %v1369 = vrcp.pop %v1284
        %v1370 = vmul.f32 1.0, %v1369
        %v1371 = vrcp.pop %v1285
        %v1372 = vmul.f32 1.0, %v1371
        %v1373 = vrcp.pop %v1286
        %v1374 = vmul.f32 1.0, %v1373
        %v1375 = vrcp.pop %v1287
        %v1376 = vmul.f32 1.0, %v1375
        %v1377 = vrcp.pop %v1288
        %v1378 = vmul.f32 1.0, %v1377
        %v1379 = vrcp.pop %v1289
        %v1380 = vmul.f32 1.0, %v1379
        %v1381 = vrcp.pop %v1290
        %v1382 = vmul.f32 1.0, %v1381
        %v1383 = vrcp.pop %v1291
        %v1384 = vmul.f32 1.0, %v1383
        %v1385 = vrcp.pop %v1292
        %v1386 = vmul.f32 1.0, %v1385
        %v1387 = vrcp.pop %v1293
        %v1388 = vmul.f32 1.0, %v1387
        %v1389 = vrcp.pop %v1294
        %v1390 = vmul.f32 1.0, %v1389
        %v1391 = vmul.f32 %v510, %v1296
        %v1392 = vmul.f32 %v512, %v1298
        %v1393 = vmul.f32 %v671, %v1300
        %v1394 = vmul.f32 %v516, %v1302
        %v1395 = vmul.f32 %v518, %v1304
        %v1396 = vmul.f32 %v676, %v1306
        %v1397 = vmul.f32 %v522, %v1308
        %v1398 = vmul.f32 %v524, %v1310
        %v1399 = vmul.f32 %v681, %v1312
        %v1400 = vmul.f32 %v528, %v1314
        %v1401 = vmul.f32 %v530, %v1316
        %v1402 = vmul.f32 %v686, %v1318
        %v1403 = vmul.f32 %v534, %v1320
        %v1404 = vmul.f32 %v536, %v1322
        %v1405 = vmul.f32 %v691, %v1324
        %v1406 = vmul.f32 %v540, %v1326
        %v1407 = vmul.f32 %v542, %v1328
        %v1408 = vmul.f32 %v696, %v1330
        %v1409 = vmul.f32 %v546, %v1332
        %v1410 = vmul.f32 %v548, %v1334
        %v1411 = vmul.f32 %v701, %v1336
        %v1412 = vmul.f32 %v552, %v1338
        %v1413 = vmul.f32 %v554, %v1340
        %v1414 = vmul.f32 %v706, %v1342
        %v1415 = vmul.f32 %v558, %v1344
        %v1416 = vmul.f32 %v560, %v1346
        %v1417 = vmul.f32 %v711, %v1348
        %v1418 = vmul.f32 %v564, %v1350
        %v1419 = vmul.f32 %v566, %v1352
        %v1420 = vmul.f32 %v716, %v1354
        %v1421 = vmul.f32 %v570, %v1356
        %v1422 = vmul.f32 %v572, %v1358
        %v1423 = vmul.f32 %v721, %v1360
        %v1424 = vmul.f32 %v576, %v1362
        %v1425 = vmul.f32 %v578, %v1364
        %v1426 = vmul.f32 %v726, %v1366
        %v1427 = vmul.f32 %v582, %v1368
        %v1428 = vmul.f32 %v584, %v1370
        %v1429 = vmul.f32 %v731, %v1372
        %v1430 = vmul.f32 %v588, %v1374
        %v1431 = vmul.f32 %v590, %v1376
        %v1432 = vmul.f32 %v736, %v1378
        %v1433 = vmul.f32 %v594, %v1380
        %v1434 = vmul.f32 %v596, %v1382
        %v1435 = vmul.f32 %v741, %v1384
        %v1436 = vmul.f32 %v600, %v1386
        %v1437 = vmul.f32 %v602, %v1388
        %v1438 = vmul.f32 %v746, %v1390
        %v1439 = vmul.f32 %v1391, %v864
        %v1440 = vmul.f32 %v1392, %v866
        %v1441 = vmul.f32 %v1393, %v1025
        %v1442 = vmul.f32 %v1394, %v870
        %v1443 = vmul.f32 %v1395, %v872
        %v1444 = vmul.f32 %v1396, %v1030
        %v1445 = vmul.f32 %v1397, %v876
        %v1446 = vmul.f32 %v1398, %v878
        %v1447 = vmul.f32 %v1399, %v1035
        %v1448 = vmul.f32 %v1400, %v882
        %v1449 = vmul.f32 %v1401, %v884
        %v1450 = vmul.f32 %v1402, %v1040
        %v1451 = vmul.f32 %v1403, %v888
        %v1452 = vmul.f32 %v1404, %v890
        %v1453 = vmul.f32 %v1405, %v1045
        %v1454 = vmul.f32 %v1406, %v894
        %v1455 = vmul.f32 %v1407, %v896
        %v1456 = vmul.f32 %v1408, %v1050
        %v1457 = vmul.f32 %v1409, %v900
        %v1458 = vmul.f32 %v1410, %v902
        %v1459 = vmul.f32 %v1411, %v1055
        %v1460 = vmul.f32 %v1412, %v906
        %v1461 = vmul.f32 %v1413, %v908
        %v1462 = vmul.f32 %v1414, %v1060
        %v1463 = vmul.f32 %v1415, %v912
        %v1464 = vmul.f32 %v1416, %v914
        %v1465 = vmul.f32 %v1417, %v1065
        %v1466 = vmul.f32 %v1418, %v918
        %v1467 = vmul.f32 %v1419, %v920
        %v1468 = vmul.f32 %v1420, %v1070
        %v1469 = vmul.f32 %v1421, %v924
        %v1470 = vmul.f32 %v1422, %v926
        %v1471 = vmul.f32 %v1423, %v1075
        %v1472 = vmul.f32 %v1424, %v930
        %v1473 = vmul.f32 %v1425, %v932
        %v1474 = vmul.f32 %v1426, %v1080
        %v1475 = vmul.f32 %v1427, %v936
        %v1476 = vmul.f32 %v1428, %v938
        %v1477 = vmul.f32 %v1429, %v1085
        %v1478 = vmul.f32 %v1430, %v942
        %v1479 = vmul.f32 %v1431, %v944
        %v1480 = vmul.f32 %v1432, %v1090
        %v1481 = vmul.f32 %v1433, %v948
        %v1482 = vmul.f32 %v1434, %v950
        %v1483 = vmul.f32 %v1435, %v1095
        %v1484 = vmul.f32 %v1436, %v954
        %v1485 = vmul.f32 %v1437, %v956
        %v1486 = vmul.f32 %v1438, %v1100
        %v1487 = vld [vmem:[%s331] sm:$0xff]
        %v1488 = vld [vmem:[%s331 + $0x8] sm:$0xff]
        %v1489 = vld [vmem:[%s331 + $0x10] sm:$0xff]
        %v1490 = vld [vmem:[%s331 + $0x18] sm:$0xff]
        %v1491 = vld [vmem:[%s331 + $0x20] sm:$0xff]
        %v1492 = vld [vmem:[%s331 + $0x28] sm:$0xff]
        %v1493 = vld [vmem:[%s331 + $0x30] sm:$0xff]
        %v1494 = vld [vmem:[%s331 + $0x38] sm:$0xff]
        %v1495 = vld [vmem:[%s331 + $0x40] sm:$0xff]
        %v1496 = vld [vmem:[%s331 + $0x48] sm:$0xff]
        %v1497 = vld [vmem:[%s331 + $0x50] sm:$0xff]
        %v1498 = vld [vmem:[%s331 + $0x58] sm:$0xff]
        %v1499 = vld [vmem:[%s331 + $0x60] sm:$0xff]
        %v1500 = vld [vmem:[%s331 + $0x68] sm:$0xff]
        %v1501 = vld [vmem:[%s331 + $0x70] sm:$0xff]
        %v1502 = vld [vmem:[%s331 + $0x78] sm:$0xff]
        %v1503 = vld [vmem:[%s331 + $0x80] sm:$0xff]
        %v1504 = vld [vmem:[%s331 + $0x88] sm:$0xff]
        %v1505 = vld [vmem:[%s331 + $0x90] sm:$0xff]
        %v1506 = vld [vmem:[%s331 + $0x98] sm:$0xff]
        %v1507 = vld [vmem:[%s331 + $0xa0] sm:$0xff]
        %v1508 = vld [vmem:[%s331 + $0xa8] sm:$0xff]
        %v1509 = vld [vmem:[%s331 + $0xb0] sm:$0xff]
        %v1510 = vld [vmem:[%s331 + $0xb8] sm:$0xff]
        %v1511 = vld [vmem:[%s331 + $0xc0] sm:$0xff]
        %v1512 = vld [vmem:[%s331 + $0xc8] sm:$0xff]
        %v1513 = vld [vmem:[%s331 + $0xd0] sm:$0xff]
        %v1514 = vld [vmem:[%s331 + $0xd8] sm:$0xff]
        %v1515 = vld [vmem:[%s331 + $0xe0] sm:$0xff]
        %v1516 = vld [vmem:[%s331 + $0xe8] sm:$0xff]
        %v1517 = vld [vmem:[%s331 + $0xf0] sm:$0xff]
        %v1518 = vld [vmem:[%s331 + $0xf8] sm:$0xff]
        %v1519 = vld [vmem:[%s331 + $0x100] sm:$0xff]
        %v1520 = vld [vmem:[%s331 + $0x108] sm:$0xff]
        %v1521 = vld [vmem:[%s331 + $0x110] sm:$0xff]
        %v1522 = vld [vmem:[%s331 + $0x118] sm:$0xff]
        %v1523 = vld [vmem:[%s331 + $0x120] sm:$0xff]
        %v1524 = vld [vmem:[%s331 + $0x128] sm:$0xff]
        %v1525 = vld [vmem:[%s331 + $0x130] sm:$0xff]
        %v1526 = vld [vmem:[%s331 + $0x138] sm:$0xff]
        %v1527 = vld [vmem:[%s331 + $0x140] sm:$0xff]
        %v1528 = vld [vmem:[%s331 + $0x148] sm:$0xff]
        %v1529 = vld [vmem:[%s331 + $0x150] sm:$0xff]
        %v1530 = vld [vmem:[%s331 + $0x158] sm:$0xff]
        %v1531 = vld [vmem:[%s331 + $0x160] sm:$0xff]
        %v1532 = vld [vmem:[%s331 + $0x168] sm:$0xff]
        %v1533 = vld [vmem:[%s331 + $0x170] sm:$0xff]
        %v1534 = vld [vmem:[%s331 + $0x178] sm:$0xff]
        %1535 = vmatprep.subr.mxu0 0.0
        %1536 = vmatpush1.msra.mxu0 %v1502
        %1537 = vmatprep.subr.mxu0 0.0
        %1538 = vmatpush1.msra.mxu0 %v1501
        %1539 = vmatprep.subr.mxu0 0.0
        %1540 = vmatpush1.msra.mxu0 %v1500
        %1541 = vmatprep.subr.mxu0 0.0
        %1542 = vmatpush1.msra.mxu0 %v1499
        %1543 = vmatprep.subr.mxu0 0.0
        %1544 = vmatpush1.msra.mxu0 %v1498
        %1545 = vmatprep.subr.mxu0 0.0
        %1546 = vmatpush1.msra.mxu0 %v1497
        %1547 = vmatprep.subr.mxu0 0.0
        %1548 = vmatpush1.msra.mxu0 %v1496
        %1549 = vmatprep.subr.mxu0 0.0
        %1550 = vmatpush1.msra.mxu0 %v1495
        %1551 = vmatprep.subr.mxu0 0.0
        %1552 = vmatpush1.msra.mxu0 %v1494
        %1553 = vmatprep.subr.mxu0 0.0
        %1554 = vmatpush1.msra.mxu0 %v1493
        %1555 = vmatprep.subr.mxu0 0.0
        %1556 = vmatpush1.msra.mxu0 %v1492
        %1557 = vmatprep.subr.mxu0 0.0
        %1558 = vmatpush1.msra.mxu0 %v1491
        %1559 = vmatprep.subr.mxu0 0.0
        %1560 = vmatpush1.msra.mxu0 %v1490
        %1561 = vmatprep.subr.mxu0 0.0
        %1562 = vmatpush1.msra.mxu0 %v1489
        %1563 = vmatprep.subr.mxu0 0.0
        %1564 = vmatpush1.msra.mxu0 %v1488
        %1565 = vmatprep.subr.mxu0 0.0
        %1566 = vmatpush1.msra.mxu0 %v1487
        %1567 = vmatprep.subr.mxu0 0.0
        %1568 = vmatpush2.msra.mxu0 %v1518
        %1569 = vmatprep.subr.mxu0 0.0
        %1570 = vmatpush2.msra.mxu0 %v1517
        %1571 = vmatprep.subr.mxu0 0.0
        %1572 = vmatpush2.msra.mxu0 %v1516
        %1573 = vmatprep.subr.mxu0 0.0
        %1574 = vmatpush2.msra.mxu0 %v1515
        %1575 = vmatprep.subr.mxu0 0.0
        %1576 = vmatpush2.msra.mxu0 %v1514
        %1577 = vmatprep.subr.mxu0 0.0
        %1578 = vmatpush2.msra.mxu0 %v1513
        %1579 = vmatprep.subr.mxu0 0.0
        %1580 = vmatpush2.msra.mxu0 %v1512
        %1581 = vmatprep.subr.mxu0 0.0
        %1582 = vmatpush2.msra.mxu0 %v1511
        %1583 = vmatprep.subr.mxu0 0.0
        %1584 = vmatpush2.msra.mxu0 %v1510
        %1585 = vmatprep.subr.mxu0 0.0
        %1586 = vmatpush2.msra.mxu0 %v1509
        %1587 = vmatprep.subr.mxu0 0.0
        %1588 = vmatpush2.msra.mxu0 %v1508
        %1589 = vmatprep.subr.mxu0 0.0
        %1590 = vmatpush2.msra.mxu0 %v1507
        %1591 = vmatprep.subr.mxu0 0.0
        %1592 = vmatpush2.msra.mxu0 %v1506
        %1593 = vmatprep.subr.mxu0 0.0
        %1594 = vmatpush2.msra.mxu0 %v1505
        %1595 = vmatprep.subr.mxu0 0.0
        %1596 = vmatpush2.msra.mxu0 %v1504
        %1597 = vmatprep.subr.mxu0 0.0
        %1598 = vmatpush2.msra.mxu0 %v1503
        %1599 = vmatprep.mubr.f32.mxu0 %v1440
        %1600 = vmatmul.mubr.f32.gmra.mxu0 %v1439
        %v1601 = vpop.f32.mrf.mxu0
        %v1602 = vadd.f32 0.0, %v1601
        %v1603 = vpop.f32.mrf.mxu0
        %1604 = vmatprep.mubr.f32.mxu0 %v1443
        %1605 = vmatmul.mubr.f32.gmra.mxu0 %v1442
        %v1606 = vpop.f32.mrf.mxu0
        %v1607 = vadd.f32 0.0, %v1606
        %v1608 = vpop.f32.mrf.mxu0
        %1609 = vmatprep.mubr.f32.mxu0 %v1446
        %1610 = vmatmul.mubr.f32.gmra.mxu0 %v1445
        %v1611 = vpop.f32.mrf.mxu0
        %v1612 = vadd.f32 0.0, %v1611
        %v1613 = vpop.f32.mrf.mxu0
        %1614 = vmatprep.mubr.f32.mxu0 %v1449
        %1615 = vmatmul.mubr.f32.gmra.mxu0 %v1448
        %v1616 = vpop.f32.mrf.mxu0
        %v1617 = vadd.f32 0.0, %v1616
        %v1618 = vpop.f32.mrf.mxu0
        %1619 = vmatprep.mubr.f32.mxu0 %v1452
        %1620 = vmatmul.mubr.f32.gmra.mxu0 %v1451
        %v1621 = vpop.f32.mrf.mxu0
        %v1622 = vadd.f32 0.0, %v1621
        %v1623 = vpop.f32.mrf.mxu0
        %1624 = vmatprep.mubr.f32.mxu0 %v1455
        %1625 = vmatmul.mubr.f32.gmra.mxu0 %v1454
        %v1626 = vpop.f32.mrf.mxu0
        %v1627 = vadd.f32 0.0, %v1626
        %v1628 = vpop.f32.mrf.mxu0
        %1629 = vmatprep.mubr.f32.mxu0 %v1458
        %1630 = vmatmul.mubr.f32.gmra.mxu0 %v1457
        %v1631 = vpop.f32.mrf.mxu0
        %v1632 = vadd.f32 0.0, %v1631
        %v1633 = vpop.f32.mrf.mxu0
        %1634 = vmatprep.mubr.f32.mxu0 %v1461
        %1635 = vmatmul.mubr.f32.gmra.mxu0 %v1460
        %v1636 = vpop.f32.mrf.mxu0
        %v1637 = vadd.f32 0.0, %v1636
        %v1638 = vpop.f32.mrf.mxu0
        %1639 = vmatprep.mubr.f32.mxu0 %v1464
        %1640 = vmatmul.mubr.f32.gmra.mxu0 %v1463
        %v1641 = vpop.f32.mrf.mxu0
        %v1642 = vadd.f32 0.0, %v1641
        %v1643 = vpop.f32.mrf.mxu0
        %1644 = vmatprep.mubr.f32.mxu0 %v1467
        %1645 = vmatmul.mubr.f32.gmra.mxu0 %v1466
        %v1646 = vpop.f32.mrf.mxu0
        %v1647 = vadd.f32 0.0, %v1646
        %v1648 = vpop.f32.mrf.mxu0
        %1649 = vmatprep.mubr.f32.mxu0 %v1470
        %1650 = vmatmul.mubr.f32.gmra.mxu0 %v1469
        %v1651 = vpop.f32.mrf.mxu0
        %v1652 = vadd.f32 0.0, %v1651
        %v1653 = vpop.f32.mrf.mxu0
        %1654 = vmatprep.mubr.f32.mxu0 %v1473
        %1655 = vmatmul.mubr.f32.gmra.mxu0 %v1472
        %v1656 = vpop.f32.mrf.mxu0
        %v1657 = vadd.f32 0.0, %v1656
        %v1658 = vpop.f32.mrf.mxu0
        %1659 = vmatprep.mubr.f32.mxu0 %v1476
        %1660 = vmatmul.mubr.f32.gmra.mxu0 %v1475
        %v1661 = vpop.f32.mrf.mxu0
        %v1662 = vadd.f32 0.0, %v1661
        %v1663 = vpop.f32.mrf.mxu0
        %1664 = vmatprep.mubr.f32.mxu0 %v1479
        %1665 = vmatmul.mubr.f32.gmra.mxu0 %v1478
        %v1666 = vpop.f32.mrf.mxu0
        %v1667 = vadd.f32 0.0, %v1666
        %v1668 = vpop.f32.mrf.mxu0
        %1669 = vmatprep.mubr.f32.mxu0 %v1482
        %1670 = vmatmul.mubr.f32.gmra.mxu0 %v1481
        %v1671 = vpop.f32.mrf.mxu0
        %v1672 = vadd.f32 0.0, %v1671
        %v1673 = vpop.f32.mrf.mxu0
        %1674 = vmatprep.mubr.f32.mxu0 %v1485
        %1675 = vmatmul.mubr.f32.gmra.mxu0 %v1484
        %v1676 = vpop.f32.mrf.mxu0
        %v1677 = vadd.f32 0.0, %v1676
        %v1678 = vpop.f32.mrf.mxu0
        %1679 = vdwg.mxu0
        %1680 = vmatprep.subr.mxu0 0.0
        %1681 = vmatpush1.msra.mxu0 %v1534
        %1682 = vmatprep.subr.mxu0 0.0
        %1683 = vmatpush1.msra.mxu0 %v1533
        %1684 = vmatprep.subr.mxu0 0.0
        %1685 = vmatpush1.msra.mxu0 %v1532
        %1686 = vmatprep.subr.mxu0 0.0
        %1687 = vmatpush1.msra.mxu0 %v1531
        %1688 = vmatprep.subr.mxu0 0.0
        %1689 = vmatpush1.msra.mxu0 %v1530
        %1690 = vmatprep.subr.mxu0 0.0
        %1691 = vmatpush1.msra.mxu0 %v1529
        %1692 = vmatprep.subr.mxu0 0.0
        %1693 = vmatpush1.msra.mxu0 %v1528
        %1694 = vmatprep.subr.mxu0 0.0
        %1695 = vmatpush1.msra.mxu0 %v1527
        %1696 = vmatprep.subr.mxu0 0.0
        %1697 = vmatpush1.msra.mxu0 %v1526
        %1698 = vmatprep.subr.mxu0 0.0
        %1699 = vmatpush1.msra.mxu0 %v1525
        %1700 = vmatprep.subr.mxu0 0.0
        %1701 = vmatpush1.msra.mxu0 %v1524
        %1702 = vmatprep.subr.mxu0 0.0
        %1703 = vmatpush1.msra.mxu0 %v1523
        %1704 = vmatprep.subr.mxu0 0.0
        %1705 = vmatpush1.msra.mxu0 %v1522
        %1706 = vmatprep.subr.mxu0 0.0
        %1707 = vmatpush1.msra.mxu0 %v1521
        %1708 = vmatprep.subr.mxu0 0.0
        %1709 = vmatpush1.msra.mxu0 %v1520
        %1710 = vmatprep.subr.mxu0 0.0
        %1711 = vmatpush1.msra.mxu0 %v1519
        %1712 = vmatprep.subr.mxu0 0.0
        %1713 = vmatpush2.msra.mxu0 0.0
        %1714 = vmatprep.subr.mxu0 0.0
        %1715 = vmatpush2.msra.mxu0 0.0
        %1716 = vmatprep.subr.mxu0 0.0
        %1717 = vmatpush2.msra.mxu0 0.0
        %1718 = vmatprep.subr.mxu0 0.0
        %1719 = vmatpush2.msra.mxu0 0.0
        %1720 = vmatprep.subr.mxu0 0.0
        %1721 = vmatpush2.msra.mxu0 0.0
        %1722 = vmatprep.subr.mxu0 0.0
        %1723 = vmatpush2.msra.mxu0 0.0
        %1724 = vmatprep.subr.mxu0 0.0
        %1725 = vmatpush2.msra.mxu0 0.0
        %1726 = vmatprep.subr.mxu0 0.0
        %1727 = vmatpush2.msra.mxu0 0.0
        %1728 = vmatprep.subr.mxu0 0.0
        %1729 = vmatpush2.msra.mxu0 0.0
        %1730 = vmatprep.subr.mxu0 0.0
        %1731 = vmatpush2.msra.mxu0 0.0
        %1732 = vmatprep.subr.mxu0 0.0
        %1733 = vmatpush2.msra.mxu0 0.0
        %1734 = vmatprep.subr.mxu0 0.0
        %1735 = vmatpush2.msra.mxu0 0.0
        %1736 = vmatprep.subr.mxu0 0.0
        %1737 = vmatpush2.msra.mxu0 0.0
        %1738 = vmatprep.subr.mxu0 0.0
        %1739 = vmatpush2.msra.mxu0 0.0
        %1740 = vmatprep.subr.mxu0 0.0
        %1741 = vmatpush2.msra.mxu0 0.0
        %1742 = vmatprep.subr.mxu0 0.0
        %1743 = vmatpush2.msra.mxu0 0.0
        %1744 = vmatprep.mubr.f32.mxu0 0.0
        %1745 = vmatmul.mubr.f32.gmra.mxu0 %v1441
        %v1746 = vpop.f32.mrf.mxu0
        %v1747 = vadd.f32 %v1602, %v1746
        %v1748 = vpop.f32.mrf.mxu0
        %1749 = vmatprep.mubr.f32.mxu0 0.0
        %1750 = vmatmul.mubr.f32.gmra.mxu0 %v1444
        %v1751 = vpop.f32.mrf.mxu0
        %v1752 = vadd.f32 %v1607, %v1751
        %v1753 = vpop.f32.mrf.mxu0
        %1754 = vmatprep.mubr.f32.mxu0 0.0
        %1755 = vmatmul.mubr.f32.gmra.mxu0 %v1447
        %v1756 = vpop.f32.mrf.mxu0
        %v1757 = vadd.f32 %v1612, %v1756
        %v1758 = vpop.f32.mrf.mxu0
        %1759 = vmatprep.mubr.f32.mxu0 0.0
        %1760 = vmatmul.mubr.f32.gmra.mxu0 %v1450
        %v1761 = vpop.f32.mrf.mxu0
        %v1762 = vadd.f32 %v1617, %v1761
        %v1763 = vpop.f32.mrf.mxu0
        %1764 = vmatprep.mubr.f32.mxu0 0.0
        %1765 = vmatmul.mubr.f32.gmra.mxu0 %v1453
        %v1766 = vpop.f32.mrf.mxu0
        %v1767 = vadd.f32 %v1622, %v1766
        %v1768 = vpop.f32.mrf.mxu0
        %1769 = vmatprep.mubr.f32.mxu0 0.0
        %1770 = vmatmul.mubr.f32.gmra.mxu0 %v1456
        %v1771 = vpop.f32.mrf.mxu0
        %v1772 = vadd.f32 %v1627, %v1771
        %v1773 = vpop.f32.mrf.mxu0
        %1774 = vmatprep.mubr.f32.mxu0 0.0
        %1775 = vmatmul.mubr.f32.gmra.mxu0 %v1459
        %v1776 = vpop.f32.mrf.mxu0
        %v1777 = vadd.f32 %v1632, %v1776
        %v1778 = vpop.f32.mrf.mxu0
        %1779 = vmatprep.mubr.f32.mxu0 0.0
        %1780 = vmatmul.mubr.f32.gmra.mxu0 %v1462
        %v1781 = vpop.f32.mrf.mxu0
        %v1782 = vadd.f32 %v1637, %v1781
        %v1783 = vpop.f32.mrf.mxu0
        %1784 = vmatprep.mubr.f32.mxu0 0.0
        %1785 = vmatmul.mubr.f32.gmra.mxu0 %v1465
        %v1786 = vpop.f32.mrf.mxu0
        %v1787 = vadd.f32 %v1642, %v1786
        %v1788 = vpop.f32.mrf.mxu0
        %1789 = vmatprep.mubr.f32.mxu0 0.0
        %1790 = vmatmul.mubr.f32.gmra.mxu0 %v1468
        %v1791 = vpop.f32.mrf.mxu0
        %v1792 = vadd.f32 %v1647, %v1791
        %v1793 = vpop.f32.mrf.mxu0
        %1794 = vmatprep.mubr.f32.mxu0 0.0
        %1795 = vmatmul.mubr.f32.gmra.mxu0 %v1471
        %v1796 = vpop.f32.mrf.mxu0
        %v1797 = vadd.f32 %v1652, %v1796
        %v1798 = vpop.f32.mrf.mxu0
        %1799 = vmatprep.mubr.f32.mxu0 0.0
        %1800 = vmatmul.mubr.f32.gmra.mxu0 %v1474
        %v1801 = vpop.f32.mrf.mxu0
        %v1802 = vadd.f32 %v1657, %v1801
        %v1803 = vpop.f32.mrf.mxu0
        %1804 = vmatprep.mubr.f32.mxu0 0.0
        %1805 = vmatmul.mubr.f32.gmra.mxu0 %v1477
        %v1806 = vpop.f32.mrf.mxu0
        %v1807 = vadd.f32 %v1662, %v1806
        %v1808 = vpop.f32.mrf.mxu0
        %1809 = vmatprep.mubr.f32.mxu0 0.0
        %1810 = vmatmul.mubr.f32.gmra.mxu0 %v1480
        %v1811 = vpop.f32.mrf.mxu0
        %v1812 = vadd.f32 %v1667, %v1811
        %v1813 = vpop.f32.mrf.mxu0
        %1814 = vmatprep.mubr.f32.mxu0 0.0
        %1815 = vmatmul.mubr.f32.gmra.mxu0 %v1483
        %v1816 = vpop.f32.mrf.mxu0
        %v1817 = vadd.f32 %v1672, %v1816
        %v1818 = vpop.f32.mrf.mxu0
        %1819 = vmatprep.mubr.f32.mxu0 0.0
        %1820 = vmatmul.mubr.f32.gmra.mxu0 %v1486
        %v1821 = vpop.f32.mrf.mxu0
        %v1822 = vadd.f32 %v1677, %v1821
        %v1823 = vpop.f32.mrf.mxu0
        %1824 = vdwg.mxu0
        %1825 = vst [vmem:[%s370] sm:$0xff] %v1747
        %1826 = vst [vmem:[%s370 + $0x8] sm:$0xff] %v1752
        %1827 = vst [vmem:[%s370 + $0x10] sm:$0xff] %v1757
        %1828 = vst [vmem:[%s370 + $0x18] sm:$0xff] %v1762
        %1829 = vst [vmem:[%s370 + $0x20] sm:$0xff] %v1767
        %1830 = vst [vmem:[%s370 + $0x28] sm:$0xff] %v1772
        %1831 = vst [vmem:[%s370 + $0x30] sm:$0xff] %v1777
        %1832 = vst [vmem:[%s370 + $0x38] sm:$0xff] %v1782
        %1833 = vst [vmem:[%s370 + $0x40] sm:$0xff] %v1787
        %1834 = vst [vmem:[%s370 + $0x48] sm:$0xff] %v1792
        %1835 = vst [vmem:[%s370 + $0x50] sm:$0xff] %v1797
        %1836 = vst [vmem:[%s370 + $0x58] sm:$0xff] %v1802
        %1837 = vst [vmem:[%s370 + $0x60] sm:$0xff] %v1807
        %1838 = vst [vmem:[%s370 + $0x68] sm:$0xff] %v1812
        %1839 = vst [vmem:[%s370 + $0x70] sm:$0xff] %v1817
        %1840 = vst [vmem:[%s370 + $0x78] sm:$0xff] %v1822
        %s1841 = sand.u32 %s168, 1
        %s1842 = scalar_lea.sflag [#allocation6], %s1841
        %s1843 = sand.u32 %s168, 1
        %s1844 = smul.addr %s1843, 128
        %s1845 = scalar_lea.vmem [#allocation12], %s1844
        // Predicated region
        $region53: #{tpu_custom_call.1} parent=35 // pred_check
          %p1846 = pneg %p178
        $region54: #{tpu_custom_call.1} parent=35 // pred_check_branch
          %1848 = sbr.rel (%p1846) target = $region56
        $region55: #{tpu_custom_call.1} parent=35 // pred_region
          %s1849 = smul.u32 16, %s36
          %s1851 = ssub.s32 2048, 2048
          %1852 = vsyncadd %s1842, %s1851
          %s1853 = smul.addr %s1849, 128
          %s1854 = scalar_lea.hbm %s5, %s1853
          %s1855 = sshll.u32 %s1845, 4
          %s1856 = int_to_ptr.vmem [resolvable:$true] %s1855
          %1861 = dma.vmem_to_hbm [thread:$0]  %s1856, 2048, %s1854, %s1842, 128, 128, 8
        $region56: #{tpu_custom_call.1} parent=35 // pred_fallthru
          _
      $region36: #{tpu_custom_call.1} parent=5 // pred_fallthru
        _
      %p1862 = scmp.le.s32.totalorder 2, %s27
      // Predicated region
      $region57: #{tpu_custom_call.1} parent=5 // pred_check
        %p1863 = pneg %p1862
      $region58: #{tpu_custom_call.1} parent=5 // pred_check_branch
        %1865 = sbr.rel (%p1863) target = $region60
      $region59: #{tpu_custom_call.1} parent=5 // pred_region
        %s1866 = ssub.s32 %s27, 2
        // Predicated region
        $region61: #{tpu_custom_call.1} parent=59 // pred_check
          %p1867 = pneg %p184
        $region62: #{tpu_custom_call.1} parent=59 // pred_check_branch
          %1869 = sbr.rel (%p1867) target = $region64
        $region63: #{tpu_custom_call.1} parent=59 // pred_region
          %s1870 = sand.u32 %s169, 1
          %s1871 = scalar_lea.sflag [#allocation6], %s1870
          %s1872 = sand.u32 %s169, 1
          %s1873 = smul.addr %s1872, 128
          %s1874 = scalar_lea.vmem [#allocation12], %s1873
          %1875 = dma.done %s1871, 2048
        $region64: #{tpu_custom_call.1} parent=59 // pred_fallthru
          _
      $region60: #{tpu_custom_call.1} parent=5 // pred_fallthru
        _
    $region6: #{tpu_custom_call.1} parent=1 // loop_footer
      %s31 = sadd.s32 1, %s27
    $region7: #{tpu_custom_call.1} parent=1 // loop_footer_branch
      %26 = sbr.rel target = $region3
    $region8: #{tpu_custom_call.1} parent=1 // loop_exit
      _
    %1876 = vsyncpa [#allocation5], 1
    %s1877 = scalar_lea.sflag [#allocation5], 1
    %1878 = vsyncpa %s1877, 1
    %1879 = vsyncpa [#allocation8], 1
    %s1880 = scalar_lea.sflag [#allocation8], 1
    %1881 = vsyncpa %s1880, 1
    %1882 = vsyncpa [#allocation11], 1
    %s1883 = scalar_lea.sflag [#allocation11], 1
    %1884 = vsyncpa %s1883, 1
    %1885 = vsyncpa [#allocation6], 1
    %s1886 = scalar_lea.sflag [#allocation6], 1
    %1887 = vsyncpa %s1886, 1

</llo_original>
